<compile_context>
chip_gen: v6e
topology: v6e:2x2x1
jax: 0.10.0
libtpu: 0.0.40
codegen_flags: <defaults>
</compile_context>

<pallas_src>
import functools

import jax
import jax.numpy as jnp
from jax.experimental import pallas as pl
from jax.experimental.pallas import tpu as pltpu

EPS = 1e-5


# ----------------------------- in-kernel helpers ----------------------------
def _im2col(x2d, mask, W, HW):
    """(C, HW) f32 slab -> (9*C, HW) bf16 im2col patches.

    9 static lane rolls (XLU) + one boundary-mask multiply (VPU).  `mask` is a
    precomputed (9*C, HW) f32 slab that zeroes positions whose 3x3 source pixel
    falls outside the image (this also kills the circular wrap of the roll).
    """
    taps = []
    for dy in range(3):
        for dx in range(3):
            off = (dy - 1) * W + (dx - 1)
            taps.append(x2d if off == 0 else
                        pltpu.roll(x2d, shift=(-off) % HW, axis=1))
    return (jnp.concatenate(taps, axis=0) * mask).astype(jnp.bfloat16)


# --------------------------------- kernels ----------------------------------
def _conv1_shortcut_kernel(x_ref, w_ref, mask_ref, y1_ref, s_ref, st_ref,
                           *, W, cmid):
    """Fused conv1(3x3) + 1x1 projection shortcut (one matmul) + packed BN stats."""
    B, _, HW = x_ref.shape
    wmat = w_ref[...]                                    # (2*cmid, 9*Cin) bf16
    mask = mask_ref[...]                                 # (9*Cin, HW) f32
    ones_col = jnp.ones((HW, 1), jnp.float32)
    st = jnp.zeros((4 * cmid, 1), jnp.float32)
    for b in range(B):                                   # static unroll
        patches = _im2col(x_ref[b], mask, W, HW)         # (9*Cin, HW) bf16
        yc = jnp.dot(wmat, patches,
                     preferred_element_type=jnp.float32) # (2*cmid, HW) f32
        # per-channel [sum; sumsq] via MXU ones-dot (XLU already busy with rolls)
        st = st + jnp.dot(jnp.concatenate([yc, yc * yc], axis=0), ones_col,
                          preferred_element_type=jnp.float32)
        y1_ref[b] = yc[:cmid].astype(jnp.bfloat16)       # conv1 output
        s_ref[b] = yc[cmid:].astype(jnp.bfloat16)        # shortcut output
    st_ref[0] = st


def _conv2_kernel(y1_ref, ab_ref, w2_ref, mask_ref, y2_ref, st_ref, *, W, cmid):
    """bn1 affine (global stats) + ReLU + conv2(3x3) + packed BN stats."""
    B, _, HW = y1_ref.shape
    ab = ab_ref[...]                                     # (2*cmid, 1) f32
    a1, b1 = ab[:cmid], ab[cmid:]
    w2 = w2_ref[...]                                     # (cmid, 9*cmid) bf16
    mask = mask_ref[...]                                 # (9*cmid, HW) f32
    ones_col = jnp.ones((HW, 1), jnp.float32)
    st = jnp.zeros((2 * cmid, 1), jnp.float32)
    for b in range(B):
        act = jnp.maximum(y1_ref[b].astype(jnp.float32) * a1 + b1, 0.0)
        patches = _im2col(act, mask, W, HW)              # (9*cmid, HW) bf16
        y2 = jnp.dot(w2, patches, preferred_element_type=jnp.float32)
        st = st + jnp.dot(jnp.concatenate([y2, y2 * y2], axis=0), ones_col,
                          preferred_element_type=jnp.float32)
        y2_ref[b] = y2.astype(jnp.bfloat16)
    st_ref[0] = st


def _bn_add_relu_kernel(y2_ref, s_ref, abc_ref, out_ref, *, cmid):
    """bn2 affine + bn_shortcut affine + residual add + ReLU (pure VPU)."""
    B = y2_ref.shape[0]
    abc = abc_ref[...]                                   # (3*cmid, 1) f32
    a2, a_s, bsum = abc[:cmid], abc[cmid:2 * cmid], abc[2 * cmid:]
    for b in range(B):
        v = (y2_ref[b].astype(jnp.float32) * a2
             + s_ref[b].astype(jnp.float32) * a_s + bsum)
        out_ref[b] = jnp.maximum(v, 0.0)


# --------------------------------- wrapper ----------------------------------
def _halo_masks(H, W):
    """(9, H*W) f32: validity of the (dy,dx)-shifted source pixel for each tap."""
    r = jnp.arange(H * W, dtype=jnp.int32) // W
    c = jnp.arange(H * W, dtype=jnp.int32) % W
    rows = []
    for dy in (-1, 0, 1):
        for dx in (-1, 0, 1):
            rows.append((r + dy >= 0) & (r + dy < H) & (c + dx >= 0) & (c + dx < W))
    return jnp.stack(rows).astype(jnp.float32)


def _bn_scale_shift(s, ss, gamma, beta, count):
    """Training-mode BN (biased variance) -> per-channel affine (scale, shift)."""
    mean = s / count
    var = jnp.maximum(ss / count - mean * mean, 0.0)     # clamp: fp cancellation
    scale = gamma * jax.lax.rsqrt(var + EPS)
    shift = beta - mean * scale
    return scale, shift


def basic_block_pallas(x_nchw, params, *, block_images=2):
    """x_nchw: (N, Cin, H, W) f32.  Returns (N, Cmid, H, W) f32."""
    N, Cin, H, W = x_nchw.shape
    Cmid = params["w1"].shape[0]
    HW = H * W
    B = min(block_images, N)
    assert N % B == 0, "batch must be divisible by block_images"
    G = N // B
    count = float(N * HW)

    x = x_nchw.reshape(N, Cin, HW)                       # NCHW consumed natively

    # conv1 weights with the 1x1 shortcut embedded at the centre tap, fused into
    # a single matmul LHS of shape (2*Cmid, 9*Cin): rows [0,Cmid)=conv1, rest=sc.
    w1_mat = jnp.transpose(params["w1"], (0, 2, 3, 1)).reshape(Cmid, 9 * Cin)
    ws_embed = jnp.zeros((Cmid, 9 * Cin), jnp.float32).at[
        :, 4 * Cin:5 * Cin].set(params["ws"][:, :, 0, 0])
    w_comb = jnp.concatenate([w1_mat, ws_embed], axis=0).astype(jnp.bfloat16)
    w2_mat = jnp.transpose(params["w2"], (0, 2, 3, 1)).reshape(
        Cmid, 9 * Cmid).astype(jnp.bfloat16)

    mask9 = _halo_masks(H, W)
    mask1 = jnp.repeat(mask9, Cin, axis=0)               # (9*Cin,  HW)
    mask2 = jnp.repeat(mask9, Cmid, axis=0)              # (9*Cmid, HW)

    cparams = pltpu.CompilerParams(
        dimension_semantics=("parallel",),               # batch axis -> megacore
        # Tiny working set here; for real ResNet channel counts keep the
        # per-step set (inputs + patches + outputs, x2 buffers) under ~48 MiB on
        # v7x (64 MiB VMEM/TC) and raise towards ~96 MiB on v5e/v6e.
        vmem_limit_bytes=32 * 1024 * 1024,
    )

    def img_spec(c):
        return pl.BlockSpec((B, c, HW), lambda g: (g, 0, 0))

    def full2d(r, c):
        return pl.BlockSpec((r, c), lambda g: (0, 0))

    # ---- pass 1: fused conv1 + 1x1 shortcut (single matmul) + BN stats ----
    y1_pre, s_pre, st1 = pl.pallas_call(
        functools.partial(_conv1_shortcut_kernel, W=W, cmid=Cmid),
        grid=(G,),
        in_specs=[img_spec(Cin), full2d(2 * Cmid, 9 * Cin), full2d(9 * Cin, HW)],
        out_specs=(img_spec(Cmid), img_spec(Cmid),
                   pl.BlockSpec((1, 4 * Cmid, 1), lambda g: (g, 0, 0))),
        out_shape=(
            jax.ShapeDtypeStruct((N, Cmid, HW), jnp.bfloat16),
            jax.ShapeDtypeStruct((N, Cmid, HW), jnp.bfloat16),
            jax.ShapeDtypeStruct((G, 4 * Cmid, 1), jnp.float32),
        ),
        compiler_params=cparams,
    )(x, w_comb, mask1)

    tot1 = jnp.sum(st1, axis=0)[:, 0]                    # (4*Cmid,)
    a1, b1 = _bn_scale_shift(tot1[:Cmid], tot1[2 * Cmid:3 * Cmid],
                             params["g1"], params["b1"], count)
    a_s, b_s = _bn_scale_shift(tot1[Cmid:2 * Cmid], tot1[3 * Cmid:],
                               params["gs"], params["bs"], count)
    ab1 = jnp.concatenate([a1, b1]).reshape(2 * Cmid, 1)  # packed affine, 1 DMA

    # ---- pass 2: bn1 + relu + conv2 + BN stats ----
    y2_pre, st2 = pl.pallas_call(
        functools.partial(_conv2_kernel, W=W, cmid=Cmid),
        grid=(G,),
        in_specs=[img_spec(Cmid), full2d(2 * Cmid, 1),
                  full2d(Cmid, 9 * Cmid), full2d(9 * Cmid, HW)],
        out_specs=(img_spec(Cmid),
                   pl.BlockSpec((1, 2 * Cmid, 1), lambda g: (g, 0, 0))),
        out_shape=(
            jax.ShapeDtypeStruct((N, Cmid, HW), jnp.bfloat16),
            jax.ShapeDtypeStruct((G, 2 * Cmid, 1), jnp.float32),
        ),
        compiler_params=cparams,
    )(y1_pre, ab1, w2_mat, mask2)

    tot2 = jnp.sum(st2, axis=0)[:, 0]
    a2, b2 = _bn_scale_shift(tot2[:Cmid], tot2[Cmid:],
                             params["g2"], params["b2"], count)
    abc = jnp.concatenate([a2, a_s, b2 + b_s]).reshape(3 * Cmid, 1)

    # ---- pass 3: bn2 + bn_shortcut + residual add + relu ----
    out_flat = pl.pallas_call(
        functools.partial(_bn_add_relu_kernel, cmid=Cmid),
        grid=(G,),
        in_specs=[img_spec(Cmid), img_spec(Cmid), full2d(3 * Cmid, 1)],
        out_specs=img_spec(Cmid),
        out_shape=jax.ShapeDtypeStruct((N, Cmid, HW), jnp.float32),
        compiler_params=cparams,
    )(y2_pre, s_pre, abc)

    # (N, C, H*W) is already NCHW order -> free reshape, no transpose needed.
    return out_flat.reshape(N, Cmid, H, W)


# ----------------------- pure-JAX reference (NCHW) --------------------------
def basic_block_ref(x, params):
    def conv(x, w, pad):
        return jax.lax.conv_general_dilated(
            x, w, (1, 1), ((pad, pad), (pad, pad)),
            dimension_numbers=("NCHW", "OIHW", "NCHW"))

    def bn(x, g, b):
        mean = x.mean(axis=(0, 2, 3), keepdims=True)
        var = ((x - mean) ** 2).mean(axis=(0, 2, 3), keepdims=True)
        return ((x - mean) * jax.lax.rsqrt(var + EPS)
                * g.reshape(1, -1, 1, 1) + b.reshape(1, -1, 1, 1))

    out = jax.nn.relu(bn(conv(x, params["w1"], 1), params["g1"], params["b1"]))
    out = bn(conv(out, params["w2"], 1), params["g2"], params["b2"])
    sc = bn(conv(x, params["ws"], 0), params["gs"], params["bs"])
    return jax.nn.relu(out + sc)


if __name__ == "__main__":
    # Deterministic synthetic parameters (shapes follow BasicBlock(4, 8)).
    in_planes, planes = 4, 8
    N, H, W = 4, 16, 16          # N=4 with block_images=2 -> grid=(2,) (even)

    key = jax.random.PRNGKey(0)
    k = jax.random.split(key, 10)
    params = {
        "w1": 0.1 * jax.random.normal(k[0], (planes, in_planes, 3, 3), jnp.float32),
        "w2": 0.1 * jax.random.normal(k[1], (planes, planes, 3, 3), jnp.float32),
        "ws": 0.1 * jax.random.normal(k[2], (planes, in_planes, 1, 1), jnp.float32),
        "g1": 1.0 + 0.1 * jax.random.normal(k[3], (planes,), jnp.float32),
        "b1": 0.1 * jax.random.normal(k[4], (planes,), jnp.float32),
        "g2": 1.0 + 0.1 * jax.random.normal(k[5], (planes,), jnp.float32),
        "b2": 0.1 * jax.random.normal(k[6], (planes,), jnp.float32),
        "gs": jnp.ones((planes,), jnp.float32),
        "bs": jnp.zeros((planes,), jnp.float32),
    }

    x = jax.random.normal(k[9], (N, in_planes, H, W), jnp.float32)

    out = jax.block_until_ready(jax.jit(basic_block_pallas)(x, params))
    ref = jax.block_until_ready(basic_block_ref(x, params))

    assert out.shape == (N, planes, H, W)
    err = float(jnp.max(jnp.abs(out - ref)))
    # bf16 MXU operands + bf16 intermediates -> looser tolerance than pure f32.
    assert jnp.allclose(out, ref, atol=1e-1, rtol=1e-1), err
    print("KERNEL_OK")
</pallas_src>

<mosaic_0001>
module attributes {stable_mosaic.version = 11 : i64} {
  func.func @_conv1_shortcut_kernel(%arg0: i32, %arg1: memref<2x4x256xf32, #tpu.memory_space<vmem>>, %arg2: memref<16x36xbf16, #tpu.memory_space<vmem>>, %arg3: memref<36x256xf32, #tpu.memory_space<vmem>>, %arg4: memref<2x8x256xbf16, #tpu.memory_space<vmem>>, %arg5: memref<2x8x256xbf16, #tpu.memory_space<vmem>>, %arg6: memref<1x32x1xf32, #tpu.memory_space<vmem>>) attributes {dimension_semantics = [#tpu.dimension_semantics<parallel>], iteration_bounds = array<i64: 2>, scalar_prefetch = 0 : i64, scratch_operands = 0 : i64, tpu.core_type = #tpu.core_type<tc>, window_params = [{transform_indices = @transform_0, window_bounds = array<i64: 2, 4, 256>}, {pipeline_mode = #tpu.pipeline_mode<synchronous>, transform_indices = @transform_1, window_bounds = array<i64: 16, 36>}, {pipeline_mode = #tpu.pipeline_mode<synchronous>, transform_indices = @transform_2, window_bounds = array<i64: 36, 256>}, {transform_indices = @transform_3, window_bounds = array<i64: 2, 8, 256>}, {transform_indices = @transform_4, window_bounds = array<i64: 2, 8, 256>}, {transform_indices = @transform_5, window_bounds = array<i64: 1, 32, 1>}]} {
    %c0 = arith.constant 0 : index
    %c0_0 = arith.constant 0 : index
    %0 = vector.load %arg2[%c0, %c0_0] : memref<16x36xbf16, #tpu.memory_space<vmem>>, vector<16x36xbf16>
    %c0_1 = arith.constant 0 : index
    %c0_2 = arith.constant 0 : index
    %1 = vector.load %arg3[%c0_1, %c0_2] : memref<36x256xf32, #tpu.memory_space<vmem>>, vector<36x256xf32>
    %cst = arith.constant 1.000000e+00 : f32
    %2 = vector.broadcast %cst : f32 to vector<256x1xf32>
    %cst_3 = arith.constant 0.000000e+00 : f32
    %3 = vector.broadcast %cst_3 : f32 to vector<32x1xf32>
    %c0_4 = arith.constant 0 : index
    %c0_5 = arith.constant 0 : index
    %c0_6 = arith.constant 0 : index
    %4 = vector.load %arg1[%c0_4, %c0_5, %c0_6] : memref<2x4x256xf32, #tpu.memory_space<vmem>>, vector<1x4x256xf32>
    %5 = vector.shape_cast %4 : vector<1x4x256xf32> to vector<4x256xf32>
    %c17_i32 = arith.constant 17 : i32
    %6 = tpu.dynamic_rotate %5 by %c17_i32 dim 1 : vector<4x256xf32>, i32 -> vector<4x256xf32>
    %c16_i32 = arith.constant 16 : i32
    %7 = tpu.dynamic_rotate %5 by %c16_i32 dim 1 : vector<4x256xf32>, i32 -> vector<4x256xf32>
    %c15_i32 = arith.constant 15 : i32
    %8 = tpu.dynamic_rotate %5 by %c15_i32 dim 1 : vector<4x256xf32>, i32 -> vector<4x256xf32>
    %c1_i32 = arith.constant 1 : i32
    %9 = tpu.dynamic_rotate %5 by %c1_i32 dim 1 : vector<4x256xf32>, i32 -> vector<4x256xf32>
    %c255_i32 = arith.constant 255 : i32
    %10 = tpu.dynamic_rotate %5 by %c255_i32 dim 1 : vector<4x256xf32>, i32 -> vector<4x256xf32>
    %c241_i32 = arith.constant 241 : i32
    %11 = tpu.dynamic_rotate %5 by %c241_i32 dim 1 : vector<4x256xf32>, i32 -> vector<4x256xf32>
    %c240_i32 = arith.constant 240 : i32
    %12 = tpu.dynamic_rotate %5 by %c240_i32 dim 1 : vector<4x256xf32>, i32 -> vector<4x256xf32>
    %c239_i32 = arith.constant 239 : i32
    %13 = tpu.dynamic_rotate %5 by %c239_i32 dim 1 : vector<4x256xf32>, i32 -> vector<4x256xf32>
    %14 = tpu.concatenate %6, %7, %8, %9, %5, %10, %11, %12, %13 in 0 : vector<4x256xf32>, vector<4x256xf32>, vector<4x256xf32>, vector<4x256xf32>, vector<4x256xf32>, vector<4x256xf32>, vector<4x256xf32>, vector<4x256xf32>, vector<4x256xf32> -> vector<36x256xf32>
    %15 = arith.mulf %14, %1 : vector<36x256xf32>
    %16 = arith.truncf %15 : vector<36x256xf32> to vector<36x256xbf16>
    %cst_7 = arith.constant dense<0.000000e+00> : vector<16x256xf32>
    %17 = tpu.matmul %0, %16, %cst_7 {dimension_numbers = #tpu.dot_dimension_numbers<[1], [0], [0], [1], [0, 0, 1, 1], [], []>} : vector<16x36xbf16>, vector<36x256xbf16>, vector<16x256xf32> -> vector<16x256xf32>
    %18 = arith.mulf %17, %17 : vector<16x256xf32>
    %19 = tpu.concatenate %17, %18 in 0 : vector<16x256xf32>, vector<16x256xf32> -> vector<32x256xf32>
    %cst_8 = arith.constant dense<0.000000e+00> : vector<32x1xf32>
    %20 = tpu.matmul %19, %2, %cst_8 {dimension_numbers = #tpu.dot_dimension_numbers<[1], [0], [0], [1], [0, 0, 1, 1], [], []>} : vector<32x256xf32>, vector<256x1xf32>, vector<32x1xf32> -> vector<32x1xf32>
    %21 = arith.addf %3, %20 : vector<32x1xf32>
    %22 = vector.extract_strided_slice %17 {offsets = [0, 0], sizes = [8, 256], strides = [1, 1]} : vector<16x256xf32> to vector<8x256xf32>
    %23 = arith.truncf %22 : vector<8x256xf32> to vector<8x256xbf16>
    %c0_9 = arith.constant 0 : index
    %c0_10 = arith.constant 0 : index
    %c0_11 = arith.constant 0 : index
    %24 = vector.load %arg4[%c0_9, %c0_10, %c0_11] : memref<2x8x256xbf16, #tpu.memory_space<vmem>>, vector<1x8x256xbf16>
    %25 = vector.shape_cast %24 : vector<1x8x256xbf16> to vector<8x256xbf16>
    %26 = vector.shape_cast %23 : vector<8x256xbf16> to vector<1x8x256xbf16>
    tpu.vector_store %arg4[%c0_9, %c0_10, %c0_11], %26 {strides = array<i32>} : memref<2x8x256xbf16, #tpu.memory_space<vmem>>, vector<1x8x256xbf16>,
    %27 = vector.extract_strided_slice %17 {offsets = [8, 0], sizes = [8, 256], strides = [1, 1]} : vector<16x256xf32> to vector<8x256xf32>
    %28 = arith.truncf %27 : vector<8x256xf32> to vector<8x256xbf16>
    %c0_12 = arith.constant 0 : index
    %c0_13 = arith.constant 0 : index
    %c0_14 = arith.constant 0 : index
    %29 = vector.load %arg5[%c0_12, %c0_13, %c0_14] : memref<2x8x256xbf16, #tpu.memory_space<vmem>>, vector<1x8x256xbf16>
    %30 = vector.shape_cast %29 : vector<1x8x256xbf16> to vector<8x256xbf16>
    %31 = vector.shape_cast %28 : vector<8x256xbf16> to vector<1x8x256xbf16>
    tpu.vector_store %arg5[%c0_12, %c0_13, %c0_14], %31 {strides = array<i32>} : memref<2x8x256xbf16, #tpu.memory_space<vmem>>, vector<1x8x256xbf16>,
    %c1 = arith.constant 1 : index
    %c0_15 = arith.constant 0 : index
    %c0_16 = arith.constant 0 : index
    %32 = vector.load %arg1[%c1, %c0_15, %c0_16] : memref<2x4x256xf32, #tpu.memory_space<vmem>>, vector<1x4x256xf32>
    %33 = vector.shape_cast %32 : vector<1x4x256xf32> to vector<4x256xf32>
    %c17_i32_17 = arith.constant 17 : i32
    %34 = tpu.dynamic_rotate %33 by %c17_i32_17 dim 1 : vector<4x256xf32>, i32 -> vector<4x256xf32>
    %c16_i32_18 = arith.constant 16 : i32
    %35 = tpu.dynamic_rotate %33 by %c16_i32_18 dim 1 : vector<4x256xf32>, i32 -> vector<4x256xf32>
    %c15_i32_19 = arith.constant 15 : i32
    %36 = tpu.dynamic_rotate %33 by %c15_i32_19 dim 1 : vector<4x256xf32>, i32 -> vector<4x256xf32>
    %c1_i32_20 = arith.constant 1 : i32
    %37 = tpu.dynamic_rotate %33 by %c1_i32_20 dim 1 : vector<4x256xf32>, i32 -> vector<4x256xf32>
    %c255_i32_21 = arith.constant 255 : i32
    %38 = tpu.dynamic_rotate %33 by %c255_i32_21 dim 1 : vector<4x256xf32>, i32 -> vector<4x256xf32>
    %c241_i32_22 = arith.constant 241 : i32
    %39 = tpu.dynamic_rotate %33 by %c241_i32_22 dim 1 : vector<4x256xf32>, i32 -> vector<4x256xf32>
    %c240_i32_23 = arith.constant 240 : i32
    %40 = tpu.dynamic_rotate %33 by %c240_i32_23 dim 1 : vector<4x256xf32>, i32 -> vector<4x256xf32>
    %c239_i32_24 = arith.constant 239 : i32
    %41 = tpu.dynamic_rotate %33 by %c239_i32_24 dim 1 : vector<4x256xf32>, i32 -> vector<4x256xf32>
    %42 = tpu.concatenate %34, %35, %36, %37, %33, %38, %39, %40, %41 in 0 : vector<4x256xf32>, vector<4x256xf32>, vector<4x256xf32>, vector<4x256xf32>, vector<4x256xf32>, vector<4x256xf32>, vector<4x256xf32>, vector<4x256xf32>, vector<4x256xf32> -> vector<36x256xf32>
    %43 = arith.mulf %42, %1 : vector<36x256xf32>
    %44 = arith.truncf %43 : vector<36x256xf32> to vector<36x256xbf16>
    %cst_25 = arith.constant dense<0.000000e+00> : vector<16x256xf32>
    %45 = tpu.matmul %0, %44, %cst_25 {dimension_numbers = #tpu.dot_dimension_numbers<[1], [0], [0], [1], [0, 0, 1, 1], [], []>} : vector<16x36xbf16>, vector<36x256xbf16>, vector<16x256xf32> -> vector<16x256xf32>
    %46 = arith.mulf %45, %45 : vector<16x256xf32>
    %47 = tpu.concatenate %45, %46 in 0 : vector<16x256xf32>, vector<16x256xf32> -> vector<32x256xf32>
    %cst_26 = arith.constant dense<0.000000e+00> : vector<32x1xf32>
    %48 = tpu.matmul %47, %2, %cst_26 {dimension_numbers = #tpu.dot_dimension_numbers<[1], [0], [0], [1], [0, 0, 1, 1], [], []>} : vector<32x256xf32>, vector<256x1xf32>, vector<32x1xf32> -> vector<32x1xf32>
    %49 = arith.addf %21, %48 : vector<32x1xf32>
    %50 = vector.extract_strided_slice %45 {offsets = [0, 0], sizes = [8, 256], strides = [1, 1]} : vector<16x256xf32> to vector<8x256xf32>
    %51 = arith.truncf %50 : vector<8x256xf32> to vector<8x256xbf16>
    %c1_27 = arith.constant 1 : index
    %c0_28 = arith.constant 0 : index
    %c0_29 = arith.constant 0 : index
    %52 = vector.load %arg4[%c1_27, %c0_28, %c0_29] : memref<2x8x256xbf16, #tpu.memory_space<vmem>>, vector<1x8x256xbf16>
    %53 = vector.shape_cast %52 : vector<1x8x256xbf16> to vector<8x256xbf16>
    %54 = vector.shape_cast %51 : vector<8x256xbf16> to vector<1x8x256xbf16>
    tpu.vector_store %arg4[%c1_27, %c0_28, %c0_29], %54 {strides = array<i32>} : memref<2x8x256xbf16, #tpu.memory_space<vmem>>, vector<1x8x256xbf16>,
    %55 = vector.extract_strided_slice %45 {offsets = [8, 0], sizes = [8, 256], strides = [1, 1]} : vector<16x256xf32> to vector<8x256xf32>
    %56 = arith.truncf %55 : vector<8x256xf32> to vector<8x256xbf16>
    %c1_30 = arith.constant 1 : index
    %c0_31 = arith.constant 0 : index
    %c0_32 = arith.constant 0 : index
    %57 = vector.load %arg5[%c1_30, %c0_31, %c0_32] : memref<2x8x256xbf16, #tpu.memory_space<vmem>>, vector<1x8x256xbf16>
    %58 = vector.shape_cast %57 : vector<1x8x256xbf16> to vector<8x256xbf16>
    %59 = vector.shape_cast %56 : vector<8x256xbf16> to vector<1x8x256xbf16>
    tpu.vector_store %arg5[%c1_30, %c0_31, %c0_32], %59 {strides = array<i32>} : memref<2x8x256xbf16, #tpu.memory_space<vmem>>, vector<1x8x256xbf16>,
    %c0_33 = arith.constant 0 : index
    %c0_34 = arith.constant 0 : index
    %c0_35 = arith.constant 0 : index
    %60 = vector.load %arg6[%c0_33, %c0_34, %c0_35] : memref<1x32x1xf32, #tpu.memory_space<vmem>>, vector<1x32x1xf32>
    %61 = vector.shape_cast %60 : vector<1x32x1xf32> to vector<32x1xf32>
    %62 = vector.shape_cast %49 : vector<32x1xf32> to vector<1x32x1xf32>
    tpu.vector_store %arg6[%c0_33, %c0_34, %c0_35], %62 {strides = array<i32>} : memref<1x32x1xf32, #tpu.memory_space<vmem>>, vector<1x32x1xf32>,
    return
  }
  func.func @transform_0(%arg0: i32) -> (i32, i32, i32) {
    %c0_i32 = arith.constant 0 : i32
    %c0_i32_0 = arith.constant 0 : i32
    %c0_i32_1 = arith.constant 0 : i32
    return %arg0, %c0_i32, %c0_i32_0 : i32, i32, i32
  }
  func.func @transform_1(%arg0: i32) -> (i32, i32) {
    %c0_i32 = arith.constant 0 : i32
    %c0_i32_0 = arith.constant 0 : i32
    %c0_i32_1 = arith.constant 0 : i32
    return %c0_i32, %c0_i32_0 : i32, i32
  }
  func.func @transform_2(%arg0: i32) -> (i32, i32) {
    %c0_i32 = arith.constant 0 : i32
    %c0_i32_0 = arith.constant 0 : i32
    %c0_i32_1 = arith.constant 0 : i32
    return %c0_i32, %c0_i32_0 : i32, i32
  }
  func.func @transform_3(%arg0: i32) -> (i32, i32, i32) {
    %c0_i32 = arith.constant 0 : i32
    %c0_i32_0 = arith.constant 0 : i32
    %c0_i32_1 = arith.constant 0 : i32
    return %arg0, %c0_i32, %c0_i32_0 : i32, i32, i32
  }
  func.func @transform_4(%arg0: i32) -> (i32, i32, i32) {
    %c0_i32 = arith.constant 0 : i32
    %c0_i32_0 = arith.constant 0 : i32
    %c0_i32_1 = arith.constant 0 : i32
    return %arg0, %c0_i32, %c0_i32_0 : i32, i32, i32
  }
  func.func @transform_5(%arg0: i32) -> (i32, i32, i32) {
    %c0_i32 = arith.constant 0 : i32
    %c0_i32_0 = arith.constant 0 : i32
    %c0_i32_1 = arith.constant 0 : i32
    return %arg0, %c0_i32, %c0_i32_0 : i32, i32, i32
  }
}

module attributes {stable_mosaic.version = 11 : i64} {
  func.func @_conv2_kernel(%arg0: i32, %arg1: memref<2x8x256xbf16, #tpu.memory_space<vmem>>, %arg2: memref<16x1xf32, #tpu.memory_space<vmem>>, %arg3: memref<8x72xbf16, #tpu.memory_space<vmem>>, %arg4: memref<72x256xf32, #tpu.memory_space<vmem>>, %arg5: memref<2x8x256xbf16, #tpu.memory_space<vmem>>, %arg6: memref<1x16x1xf32, #tpu.memory_space<vmem>>) attributes {dimension_semantics = [#tpu.dimension_semantics<parallel>], iteration_bounds = array<i64: 2>, scalar_prefetch = 0 : i64, scratch_operands = 0 : i64, tpu.core_type = #tpu.core_type<tc>, window_params = [{transform_indices = @transform_0, window_bounds = array<i64: 2, 8, 256>}, {pipeline_mode = #tpu.pipeline_mode<synchronous>, transform_indices = @transform_1, window_bounds = array<i64: 16, 1>}, {pipeline_mode = #tpu.pipeline_mode<synchronous>, transform_indices = @transform_2, window_bounds = array<i64: 8, 72>}, {pipeline_mode = #tpu.pipeline_mode<synchronous>, transform_indices = @transform_3, window_bounds = array<i64: 72, 256>}, {transform_indices = @transform_4, window_bounds = array<i64: 2, 8, 256>}, {transform_indices = @transform_5, window_bounds = array<i64: 1, 16, 1>}]} {
    %c0 = arith.constant 0 : index
    %c0_0 = arith.constant 0 : index
    %0 = vector.load %arg2[%c0, %c0_0] : memref<16x1xf32, #tpu.memory_space<vmem>>, vector<16x1xf32>
    %1 = vector.extract_strided_slice %0 {offsets = [0, 0], sizes = [8, 1], strides = [1, 1]} : vector<16x1xf32> to vector<8x1xf32>
    %2 = vector.extract_strided_slice %0 {offsets = [8, 0], sizes = [8, 1], strides = [1, 1]} : vector<16x1xf32> to vector<8x1xf32>
    %c0_1 = arith.constant 0 : index
    %c0_2 = arith.constant 0 : index
    %3 = vector.load %arg3[%c0_1, %c0_2] : memref<8x72xbf16, #tpu.memory_space<vmem>>, vector<8x72xbf16>
    %c0_3 = arith.constant 0 : index
    %c0_4 = arith.constant 0 : index
    %4 = vector.load %arg4[%c0_3, %c0_4] : memref<72x256xf32, #tpu.memory_space<vmem>>, vector<72x256xf32>
    %cst = arith.constant 1.000000e+00 : f32
    %5 = vector.broadcast %cst : f32 to vector<256x1xf32>
    %cst_5 = arith.constant 0.000000e+00 : f32
    %6 = vector.broadcast %cst_5 : f32 to vector<16x1xf32>
    %c0_6 = arith.constant 0 : index
    %c0_7 = arith.constant 0 : index
    %c0_8 = arith.constant 0 : index
    %7 = vector.load %arg1[%c0_6, %c0_7, %c0_8] : memref<2x8x256xbf16, #tpu.memory_space<vmem>>, vector<1x8x256xbf16>
    %8 = vector.shape_cast %7 : vector<1x8x256xbf16> to vector<8x256xbf16>
    %9 = arith.extf %8 : vector<8x256xbf16> to vector<8x256xf32>
    %10 = vector.broadcast %1 : vector<8x1xf32> to vector<8x256xf32>
    %11 = arith.mulf %9, %10 : vector<8x256xf32>
    %12 = vector.broadcast %2 : vector<8x1xf32> to vector<8x256xf32>
    %13 = arith.addf %11, %12 : vector<8x256xf32>
    %cst_9 = arith.constant 0.000000e+00 : f32
    %14 = vector.broadcast %cst_9 : f32 to vector<8x256xf32>
    %15 = arith.maximumf %13, %14 : vector<8x256xf32>
    %c17_i32 = arith.constant 17 : i32
    %16 = tpu.dynamic_rotate %15 by %c17_i32 dim 1 : vector<8x256xf32>, i32 -> vector<8x256xf32>
    %c16_i32 = arith.constant 16 : i32
    %17 = tpu.dynamic_rotate %15 by %c16_i32 dim 1 : vector<8x256xf32>, i32 -> vector<8x256xf32>
    %c15_i32 = arith.constant 15 : i32
    %18 = tpu.dynamic_rotate %15 by %c15_i32 dim 1 : vector<8x256xf32>, i32 -> vector<8x256xf32>
    %c1_i32 = arith.constant 1 : i32
    %19 = tpu.dynamic_rotate %15 by %c1_i32 dim 1 : vector<8x256xf32>, i32 -> vector<8x256xf32>
    %c255_i32 = arith.constant 255 : i32
    %20 = tpu.dynamic_rotate %15 by %c255_i32 dim 1 : vector<8x256xf32>, i32 -> vector<8x256xf32>
    %c241_i32 = arith.constant 241 : i32
    %21 = tpu.dynamic_rotate %15 by %c241_i32 dim 1 : vector<8x256xf32>, i32 -> vector<8x256xf32>
    %c240_i32 = arith.constant 240 : i32
    %22 = tpu.dynamic_rotate %15 by %c240_i32 dim 1 : vector<8x256xf32>, i32 -> vector<8x256xf32>
    %c239_i32 = arith.constant 239 : i32
    %23 = tpu.dynamic_rotate %15 by %c239_i32 dim 1 : vector<8x256xf32>, i32 -> vector<8x256xf32>
    %24 = tpu.concatenate %16, %17, %18, %19, %15, %20, %21, %22, %23 in 0 : vector<8x256xf32>, vector<8x256xf32>, vector<8x256xf32>, vector<8x256xf32>, vector<8x256xf32>, vector<8x256xf32>, vector<8x256xf32>, vector<8x256xf32>, vector<8x256xf32> -> vector<72x256xf32>
    %25 = arith.mulf %24, %4 : vector<72x256xf32>
    %26 = arith.truncf %25 : vector<72x256xf32> to vector<72x256xbf16>
    %cst_10 = arith.constant dense<0.000000e+00> : vector<8x256xf32>
    %27 = tpu.matmul %3, %26, %cst_10 {dimension_numbers = #tpu.dot_dimension_numbers<[1], [0], [0], [1], [0, 0, 1, 1], [], []>} : vector<8x72xbf16>, vector<72x256xbf16>, vector<8x256xf32> -> vector<8x256xf32>
    %28 = arith.mulf %27, %27 : vector<8x256xf32>
    %29 = tpu.concatenate %27, %28 in 0 : vector<8x256xf32>, vector<8x256xf32> -> vector<16x256xf32>
    %cst_11 = arith.constant dense<0.000000e+00> : vector<16x1xf32>
    %30 = tpu.matmul %29, %5, %cst_11 {dimension_numbers = #tpu.dot_dimension_numbers<[1], [0], [0], [1], [0, 0, 1, 1], [], []>} : vector<16x256xf32>, vector<256x1xf32>, vector<16x1xf32> -> vector<16x1xf32>
    %31 = arith.addf %6, %30 : vector<16x1xf32>
    %32 = arith.truncf %27 : vector<8x256xf32> to vector<8x256xbf16>
    %c0_12 = arith.constant 0 : index
    %c0_13 = arith.constant 0 : index
    %c0_14 = arith.constant 0 : index
    %33 = vector.load %arg5[%c0_12, %c0_13, %c0_14] : memref<2x8x256xbf16, #tpu.memory_space<vmem>>, vector<1x8x256xbf16>
    %34 = vector.shape_cast %33 : vector<1x8x256xbf16> to vector<8x256xbf16>
    %35 = vector.shape_cast %32 : vector<8x256xbf16> to vector<1x8x256xbf16>
    tpu.vector_store %arg5[%c0_12, %c0_13, %c0_14], %35 {strides = array<i32>} : memref<2x8x256xbf16, #tpu.memory_space<vmem>>, vector<1x8x256xbf16>,
    %c1 = arith.constant 1 : index
    %c0_15 = arith.constant 0 : index
    %c0_16 = arith.constant 0 : index
    %36 = vector.load %arg1[%c1, %c0_15, %c0_16] : memref<2x8x256xbf16, #tpu.memory_space<vmem>>, vector<1x8x256xbf16>
    %37 = vector.shape_cast %36 : vector<1x8x256xbf16> to vector<8x256xbf16>
    %38 = arith.extf %37 : vector<8x256xbf16> to vector<8x256xf32>
    %39 = vector.broadcast %1 : vector<8x1xf32> to vector<8x256xf32>
    %40 = arith.mulf %38, %39 : vector<8x256xf32>
    %41 = vector.broadcast %2 : vector<8x1xf32> to vector<8x256xf32>
    %42 = arith.addf %40, %41 : vector<8x256xf32>
    %cst_17 = arith.constant 0.000000e+00 : f32
    %43 = vector.broadcast %cst_17 : f32 to vector<8x256xf32>
    %44 = arith.maximumf %42, %43 : vector<8x256xf32>
    %c17_i32_18 = arith.constant 17 : i32
    %45 = tpu.dynamic_rotate %44 by %c17_i32_18 dim 1 : vector<8x256xf32>, i32 -> vector<8x256xf32>
    %c16_i32_19 = arith.constant 16 : i32
    %46 = tpu.dynamic_rotate %44 by %c16_i32_19 dim 1 : vector<8x256xf32>, i32 -> vector<8x256xf32>
    %c15_i32_20 = arith.constant 15 : i32
    %47 = tpu.dynamic_rotate %44 by %c15_i32_20 dim 1 : vector<8x256xf32>, i32 -> vector<8x256xf32>
    %c1_i32_21 = arith.constant 1 : i32
    %48 = tpu.dynamic_rotate %44 by %c1_i32_21 dim 1 : vector<8x256xf32>, i32 -> vector<8x256xf32>
    %c255_i32_22 = arith.constant 255 : i32
    %49 = tpu.dynamic_rotate %44 by %c255_i32_22 dim 1 : vector<8x256xf32>, i32 -> vector<8x256xf32>
    %c241_i32_23 = arith.constant 241 : i32
    %50 = tpu.dynamic_rotate %44 by %c241_i32_23 dim 1 : vector<8x256xf32>, i32 -> vector<8x256xf32>
    %c240_i32_24 = arith.constant 240 : i32
    %51 = tpu.dynamic_rotate %44 by %c240_i32_24 dim 1 : vector<8x256xf32>, i32 -> vector<8x256xf32>
    %c239_i32_25 = arith.constant 239 : i32
    %52 = tpu.dynamic_rotate %44 by %c239_i32_25 dim 1 : vector<8x256xf32>, i32 -> vector<8x256xf32>
    %53 = tpu.concatenate %45, %46, %47, %48, %44, %49, %50, %51, %52 in 0 : vector<8x256xf32>, vector<8x256xf32>, vector<8x256xf32>, vector<8x256xf32>, vector<8x256xf32>, vector<8x256xf32>, vector<8x256xf32>, vector<8x256xf32>, vector<8x256xf32> -> vector<72x256xf32>
    %54 = arith.mulf %53, %4 : vector<72x256xf32>
    %55 = arith.truncf %54 : vector<72x256xf32> to vector<72x256xbf16>
    %cst_26 = arith.constant dense<0.000000e+00> : vector<8x256xf32>
    %56 = tpu.matmul %3, %55, %cst_26 {dimension_numbers = #tpu.dot_dimension_numbers<[1], [0], [0], [1], [0, 0, 1, 1], [], []>} : vector<8x72xbf16>, vector<72x256xbf16>, vector<8x256xf32> -> vector<8x256xf32>
    %57 = arith.mulf %56, %56 : vector<8x256xf32>
    %58 = tpu.concatenate %56, %57 in 0 : vector<8x256xf32>, vector<8x256xf32> -> vector<16x256xf32>
    %cst_27 = arith.constant dense<0.000000e+00> : vector<16x1xf32>
    %59 = tpu.matmul %58, %5, %cst_27 {dimension_numbers = #tpu.dot_dimension_numbers<[1], [0], [0], [1], [0, 0, 1, 1], [], []>} : vector<16x256xf32>, vector<256x1xf32>, vector<16x1xf32> -> vector<16x1xf32>
    %60 = arith.addf %31, %59 : vector<16x1xf32>
    %61 = arith.truncf %56 : vector<8x256xf32> to vector<8x256xbf16>
    %c1_28 = arith.constant 1 : index
    %c0_29 = arith.constant 0 : index
    %c0_30 = arith.constant 0 : index
    %62 = vector.load %arg5[%c1_28, %c0_29, %c0_30] : memref<2x8x256xbf16, #tpu.memory_space<vmem>>, vector<1x8x256xbf16>
    %63 = vector.shape_cast %62 : vector<1x8x256xbf16> to vector<8x256xbf16>
    %64 = vector.shape_cast %61 : vector<8x256xbf16> to vector<1x8x256xbf16>
    tpu.vector_store %arg5[%c1_28, %c0_29, %c0_30], %64 {strides = array<i32>} : memref<2x8x256xbf16, #tpu.memory_space<vmem>>, vector<1x8x256xbf16>,
    %c0_31 = arith.constant 0 : index
    %c0_32 = arith.constant 0 : index
    %c0_33 = arith.constant 0 : index
    %65 = vector.load %arg6[%c0_31, %c0_32, %c0_33] : memref<1x16x1xf32, #tpu.memory_space<vmem>>, vector<1x16x1xf32>
    %66 = vector.shape_cast %65 : vector<1x16x1xf32> to vector<16x1xf32>
    %67 = vector.shape_cast %60 : vector<16x1xf32> to vector<1x16x1xf32>
    tpu.vector_store %arg6[%c0_31, %c0_32, %c0_33], %67 {strides = array<i32>} : memref<1x16x1xf32, #tpu.memory_space<vmem>>, vector<1x16x1xf32>,
    return
  }
  func.func @transform_0(%arg0: i32) -> (i32, i32, i32) {
    %c0_i32 = arith.constant 0 : i32
    %c0_i32_0 = arith.constant 0 : i32
    %c0_i32_1 = arith.constant 0 : i32
    return %arg0, %c0_i32, %c0_i32_0 : i32, i32, i32
  }
  func.func @transform_1(%arg0: i32) -> (i32, i32) {
    %c0_i32 = arith.constant 0 : i32
    %c0_i32_0 = arith.constant 0 : i32
    %c0_i32_1 = arith.constant 0 : i32
    return %c0_i32, %c0_i32_0 : i32, i32
  }
  func.func @transform_2(%arg0: i32) -> (i32, i32) {
    %c0_i32 = arith.constant 0 : i32
    %c0_i32_0 = arith.constant 0 : i32
    %c0_i32_1 = arith.constant 0 : i32
    return %c0_i32, %c0_i32_0 : i32, i32
  }
  func.func @transform_3(%arg0: i32) -> (i32, i32) {
    %c0_i32 = arith.constant 0 : i32
    %c0_i32_0 = arith.constant 0 : i32
    %c0_i32_1 = arith.constant 0 : i32
    return %c0_i32, %c0_i32_0 : i32, i32
  }
  func.func @transform_4(%arg0: i32) -> (i32, i32, i32) {
    %c0_i32 = arith.constant 0 : i32
    %c0_i32_0 = arith.constant 0 : i32
    %c0_i32_1 = arith.constant 0 : i32
    return %arg0, %c0_i32, %c0_i32_0 : i32, i32, i32
  }
  func.func @transform_5(%arg0: i32) -> (i32, i32, i32) {
    %c0_i32 = arith.constant 0 : i32
    %c0_i32_0 = arith.constant 0 : i32
    %c0_i32_1 = arith.constant 0 : i32
    return %arg0, %c0_i32, %c0_i32_0 : i32, i32, i32
  }
}

module attributes {stable_mosaic.version = 11 : i64} {
  func.func @_bn_add_relu_kernel(%arg0: i32, %arg1: memref<2x8x256xbf16, #tpu.memory_space<vmem>>, %arg2: memref<2x8x256xbf16, #tpu.memory_space<vmem>>, %arg3: memref<24x1xf32, #tpu.memory_space<vmem>>, %arg4: memref<2x8x256xf32, #tpu.memory_space<vmem>>) attributes {dimension_semantics = [#tpu.dimension_semantics<parallel>], iteration_bounds = array<i64: 2>, scalar_prefetch = 0 : i64, scratch_operands = 0 : i64, tpu.core_type = #tpu.core_type<tc>, window_params = [{transform_indices = @transform_0, window_bounds = array<i64: 2, 8, 256>}, {transform_indices = @transform_1, window_bounds = array<i64: 2, 8, 256>}, {pipeline_mode = #tpu.pipeline_mode<synchronous>, transform_indices = @transform_2, window_bounds = array<i64: 24, 1>}, {transform_indices = @transform_3, window_bounds = array<i64: 2, 8, 256>}]} {
    %c0 = arith.constant 0 : index
    %c0_0 = arith.constant 0 : index
    %0 = vector.load %arg3[%c0, %c0_0] : memref<24x1xf32, #tpu.memory_space<vmem>>, vector<24x1xf32>
    %1 = vector.extract_strided_slice %0 {offsets = [0, 0], sizes = [8, 1], strides = [1, 1]} : vector<24x1xf32> to vector<8x1xf32>
    %2 = vector.extract_strided_slice %0 {offsets = [8, 0], sizes = [8, 1], strides = [1, 1]} : vector<24x1xf32> to vector<8x1xf32>
    %3 = vector.extract_strided_slice %0 {offsets = [16, 0], sizes = [8, 1], strides = [1, 1]} : vector<24x1xf32> to vector<8x1xf32>
    %c0_1 = arith.constant 0 : index
    %c0_2 = arith.constant 0 : index
    %c0_3 = arith.constant 0 : index
    %4 = vector.load %arg1[%c0_1, %c0_2, %c0_3] : memref<2x8x256xbf16, #tpu.memory_space<vmem>>, vector<1x8x256xbf16>
    %5 = vector.shape_cast %4 : vector<1x8x256xbf16> to vector<8x256xbf16>
    %6 = arith.extf %5 : vector<8x256xbf16> to vector<8x256xf32>
    %7 = vector.broadcast %1 : vector<8x1xf32> to vector<8x256xf32>
    %8 = arith.mulf %6, %7 : vector<8x256xf32>
    %c0_4 = arith.constant 0 : index
    %c0_5 = arith.constant 0 : index
    %c0_6 = arith.constant 0 : index
    %9 = vector.load %arg2[%c0_4, %c0_5, %c0_6] : memref<2x8x256xbf16, #tpu.memory_space<vmem>>, vector<1x8x256xbf16>
    %10 = vector.shape_cast %9 : vector<1x8x256xbf16> to vector<8x256xbf16>
    %11 = arith.extf %10 : vector<8x256xbf16> to vector<8x256xf32>
    %12 = vector.broadcast %2 : vector<8x1xf32> to vector<8x256xf32>
    %13 = arith.mulf %11, %12 : vector<8x256xf32>
    %14 = arith.addf %8, %13 : vector<8x256xf32>
    %15 = vector.broadcast %3 : vector<8x1xf32> to vector<8x256xf32>
    %16 = arith.addf %14, %15 : vector<8x256xf32>
    %cst = arith.constant 0.000000e+00 : f32
    %17 = vector.broadcast %cst : f32 to vector<8x256xf32>
    %18 = arith.maximumf %16, %17 : vector<8x256xf32>
    %c0_7 = arith.constant 0 : index
    %c0_8 = arith.constant 0 : index
    %c0_9 = arith.constant 0 : index
    %19 = vector.load %arg4[%c0_7, %c0_8, %c0_9] : memref<2x8x256xf32, #tpu.memory_space<vmem>>, vector<1x8x256xf32>
    %20 = vector.shape_cast %19 : vector<1x8x256xf32> to vector<8x256xf32>
    %21 = vector.shape_cast %18 : vector<8x256xf32> to vector<1x8x256xf32>
    tpu.vector_store %arg4[%c0_7, %c0_8, %c0_9], %21 {strides = array<i32>} : memref<2x8x256xf32, #tpu.memory_space<vmem>>, vector<1x8x256xf32>,
    %c1 = arith.constant 1 : index
    %c0_10 = arith.constant 0 : index
    %c0_11 = arith.constant 0 : index
    %22 = vector.load %arg1[%c1, %c0_10, %c0_11] : memref<2x8x256xbf16, #tpu.memory_space<vmem>>, vector<1x8x256xbf16>
    %23 = vector.shape_cast %22 : vector<1x8x256xbf16> to vector<8x256xbf16>
    %24 = arith.extf %23 : vector<8x256xbf16> to vector<8x256xf32>
    %25 = vector.broadcast %1 : vector<8x1xf32> to vector<8x256xf32>
    %26 = arith.mulf %24, %25 : vector<8x256xf32>
    %c1_12 = arith.constant 1 : index
    %c0_13 = arith.constant 0 : index
    %c0_14 = arith.constant 0 : index
    %27 = vector.load %arg2[%c1_12, %c0_13, %c0_14] : memref<2x8x256xbf16, #tpu.memory_space<vmem>>, vector<1x8x256xbf16>
    %28 = vector.shape_cast %27 : vector<1x8x256xbf16> to vector<8x256xbf16>
    %29 = arith.extf %28 : vector<8x256xbf16> to vector<8x256xf32>
    %30 = vector.broadcast %2 : vector<8x1xf32> to vector<8x256xf32>
    %31 = arith.mulf %29, %30 : vector<8x256xf32>
    %32 = arith.addf %26, %31 : vector<8x256xf32>
    %33 = vector.broadcast %3 : vector<8x1xf32> to vector<8x256xf32>
    %34 = arith.addf %32, %33 : vector<8x256xf32>
    %cst_15 = arith.constant 0.000000e+00 : f32
    %35 = vector.broadcast %cst_15 : f32 to vector<8x256xf32>
    %36 = arith.maximumf %34, %35 : vector<8x256xf32>
    %c1_16 = arith.constant 1 : index
    %c0_17 = arith.constant 0 : index
    %c0_18 = arith.constant 0 : index
    %37 = vector.load %arg4[%c1_16, %c0_17, %c0_18] : memref<2x8x256xf32, #tpu.memory_space<vmem>>, vector<1x8x256xf32>
    %38 = vector.shape_cast %37 : vector<1x8x256xf32> to vector<8x256xf32>
    %39 = vector.shape_cast %36 : vector<8x256xf32> to vector<1x8x256xf32>
    tpu.vector_store %arg4[%c1_16, %c0_17, %c0_18], %39 {strides = array<i32>} : memref<2x8x256xf32, #tpu.memory_space<vmem>>, vector<1x8x256xf32>,
    return
  }
  func.func @transform_0(%arg0: i32) -> (i32, i32, i32) {
    %c0_i32 = arith.constant 0 : i32
    %c0_i32_0 = arith.constant 0 : i32
    %c0_i32_1 = arith.constant 0 : i32
    return %arg0, %c0_i32, %c0_i32_0 : i32, i32, i32
  }
  func.func @transform_1(%arg0: i32) -> (i32, i32, i32) {
    %c0_i32 = arith.constant 0 : i32
    %c0_i32_0 = arith.constant 0 : i32
    %c0_i32_1 = arith.constant 0 : i32
    return %arg0, %c0_i32, %c0_i32_0 : i32, i32, i32
  }
  func.func @transform_2(%arg0: i32) -> (i32, i32) {
    %c0_i32 = arith.constant 0 : i32
    %c0_i32_0 = arith.constant 0 : i32
    %c0_i32_1 = arith.constant 0 : i32
    return %c0_i32, %c0_i32_0 : i32, i32
  }
  func.func @transform_3(%arg0: i32) -> (i32, i32, i32) {
    %c0_i32 = arith.constant 0 : i32
    %c0_i32_0 = arith.constant 0 : i32
    %c0_i32_1 = arith.constant 0 : i32
    return %arg0, %c0_i32, %c0_i32_0 : i32, i32, i32
  }
}

</mosaic_0001>

<llo_original>
// kernel: basic_block_pallas.5
$region0: #{basic_block_pallas.5}
  #allocation0 [shape = 'u32[]', space=smem, size = 0x4, offset = 0x4, fixed_abs, tag = 'smem constant byte address 0x4 - core index']
  #allocation1 [shape = 'u32[144,128]{1,0:T(1,128)}', space=vmem, size = 0x12000, scoped, tag = 'internal scratch']
  %s0 = inlined_call_operand.vmem [shape: bf16[4,8,256], index: 0, kind: input, shape index: {}]
  %s1 = inlined_call_operand.vmem [shape: bf16[4,8,256], index: 1, kind: input, shape index: {}]
  %s2 = inlined_call_operand.vmem [shape: f32[24,1], index: 2, kind: input, shape index: {}]
  %s3 = inlined_call_operand.vmem [shape: f32[4,8,256], index: 3, kind: output, shape index: {}]
  %s4 = sld [smem:[#allocation0]]
  $region45: #{basic_block_pallas.5} parent=0
    _
  %s6 = ssub.s32 1, %s4
  %s7 = scalar_select 0, %s6, %s4
  loop: start=0, step=1, limit=4
  $region2: #{basic_block_pallas.5} parent=0 // loop_pre_header
    _
  $region3: #{basic_block_pallas.5} parent=0 // loop_header
    %s9 = sphi 0, %s13
    %p10 = scmp.ge.s32.totalorder %s9, 4
    %s19 = sphi 0, %s21
    %s22 = sphi 0, %s19
    %s23 = sphi 0, %s22
    %s39 = sphi 0, %s23
    %s45 = sphi 0, %s47
    %s48 = sphi 0, %s45
    %s49 = sphi 0, %s48
    %s65 = sphi 0, %s49
    %s69 = sphi 0, %s69
    %s71 = sphi 0, %s69
    %s72 = sphi 0, %s71
    %s86 = sphi 0, %s72
    %s92 = sphi 0, %s94
    %s95 = sphi 0, %s92
    %s96 = sphi 0, %s95
    %s112 = sphi 0, %s96
  $region4: #{basic_block_pallas.5} parent=0 // loop_header_branch
    %12 = sbr.rel (%p10) target = $region8
  $region5: #{basic_block_pallas.5} parent=0 // loop_body
    %s14 = ssub.s32 %s9, 1
    %s15 = ssub.s32 %s9, 2
    %s16 = sadd.s32 %s9, 1
    %s17 = ssub.s32 %s9, %s16
    %p18 = scmp.eq.s32.totalorder %s17, 0
    %s20 = sadd.s32 %s19, 1
    %s21 = scalar_select %p18, %s19, %s20
    %p24 = pneg %p18
    %p25 = scmp.eq.s32.totalorder %s9, 1
    %p26 = por %p24, %p25
    %p27 = scmp.ne.s32.totalorder %s19, %s22
    %p28 = scmp.eq.s32.totalorder %s9, 0
    %p29 = por %p27, %p28
    %p30 = scmp.ne.s32.totalorder %s19, %s22
    %p31 = scmp.eq.s32.totalorder %s14, 1
    %p32 = por %p30, %p31
    %p33 = scmp.ne.s32.totalorder %s22, %s23
    %p34 = scmp.eq.s32.totalorder %s14, 0
    %p35 = por %p33, %p34
    %p36 = scmp.ne.s32.totalorder %s22, %s23
    %p37 = scmp.eq.s32.totalorder %s15, 1
    %p38 = por %p36, %p37
    %p40 = scmp.ne.s32.totalorder %s23, %s39
    %p41 = scmp.eq.s32.totalorder %s15, 0
    %p42 = por %p40, %p41
    %s43 = ssub.s32 %s9, %s16
    %p44 = scmp.eq.s32.totalorder %s43, 0
    %s46 = sadd.s32 %s45, 1
    %s47 = scalar_select %p44, %s45, %s46
    %p50 = pneg %p44
    %p51 = scmp.eq.s32.totalorder %s9, 1
    %p52 = por %p50, %p51
    %p53 = scmp.ne.s32.totalorder %s45, %s48
    %p54 = scmp.eq.s32.totalorder %s9, 0
    %p55 = por %p53, %p54
    %p56 = scmp.ne.s32.totalorder %s45, %s48
    %p57 = scmp.eq.s32.totalorder %s14, 1
    %p58 = por %p56, %p57
    %p59 = scmp.ne.s32.totalorder %s48, %s49
    %p60 = scmp.eq.s32.totalorder %s14, 0
    %p61 = por %p59, %p60
    %p62 = scmp.ne.s32.totalorder %s48, %s49
    %p63 = scmp.eq.s32.totalorder %s15, 1
    %p64 = por %p62, %p63
    %p66 = scmp.ne.s32.totalorder %s49, %s65
    %p67 = scmp.eq.s32.totalorder %s15, 0
    %p68 = por %p66, %p67
    %s70 = sadd.s32 %s69, 1
    %p73 = scmp.eq.s32.totalorder %s9, 1
    %p74 = scmp.ne.s32.totalorder %s69, %s71
    %p75 = scmp.eq.s32.totalorder %s9, 0
    %p76 = por %p74, %p75
    %p77 = scmp.ne.s32.totalorder %s69, %s71
    %p78 = scmp.eq.s32.totalorder %s14, 1
    %p79 = por %p77, %p78
    %p80 = scmp.ne.s32.totalorder %s71, %s72
    %p81 = scmp.eq.s32.totalorder %s14, 0
    %p82 = por %p80, %p81
    %p83 = scmp.ne.s32.totalorder %s71, %s72
    %p84 = scmp.eq.s32.totalorder %s15, 1
    %p85 = por %p83, %p84
    %p87 = scmp.ne.s32.totalorder %s72, %s86
    %p88 = scmp.eq.s32.totalorder %s15, 0
    %p89 = por %p87, %p88
    %s90 = ssub.s32 %s9, %s16
    %p91 = scmp.eq.s32.totalorder %s90, 0
    %s93 = sadd.s32 %s92, 1
    %s94 = scalar_select %p91, %s92, %s93
    %p97 = pneg %p91
    %p98 = scmp.eq.s32.totalorder %s9, 1
    %p99 = por %p97, %p98
    %p100 = scmp.ne.s32.totalorder %s92, %s95
    %p101 = scmp.eq.s32.totalorder %s9, 0
    %p102 = por %p100, %p101
    %p103 = scmp.ne.s32.totalorder %s92, %s95
    %p104 = scmp.eq.s32.totalorder %s14, 1
    %p105 = por %p103, %p104
    %p106 = scmp.ne.s32.totalorder %s95, %s96
    %p107 = scmp.eq.s32.totalorder %s14, 0
    %p108 = por %p106, %p107
    %p109 = scmp.ne.s32.totalorder %s95, %s96
    %p110 = scmp.eq.s32.totalorder %s15, 1
    %p111 = por %p109, %p110
    %p113 = scmp.ne.s32.totalorder %s96, %s112
    %p114 = scmp.eq.s32.totalorder %s15, 0
    %p115 = por %p113, %p114
    %p116 = scmp.le.s32.totalorder 1, %s9
    %p117 = scmp.lt.s32.totalorder %s9, 3
    %p118 = pnand %p116, %p117
    %p119 = pneg %p118
    // Predicated region
    $region9: #{basic_block_pallas.5} parent=5 // pred_check
      _
    $region10: #{basic_block_pallas.5} parent=5 // pred_check_branch
      %121 = sbr.rel (%p118) target = $region12
    $region11: #{basic_block_pallas.5} parent=5 // pred_region
      %s122 = ssub.s32 %s9, 1
      // Predicated region
      $region13: #{basic_block_pallas.5} parent=11 // pred_check
        %p123 = pneg %p82
      $region14: #{basic_block_pallas.5} parent=11 // pred_check_branch
        %125 = sbr.rel (%p123) target = $region16
      $region15: #{basic_block_pallas.5} parent=11 // pred_region
        _
      $region16: #{basic_block_pallas.5} parent=11 // pred_fallthru
        _
    $region12: #{basic_block_pallas.5} parent=5 // pred_fallthru
      _
    %p126 = scmp.lt.s32.totalorder %s9, 2
    // Predicated region
    $region17: #{basic_block_pallas.5} parent=5 // pred_check
      %p127 = pneg %p126
    $region18: #{basic_block_pallas.5} parent=5 // pred_check_branch
      %129 = sbr.rel (%p127) target = $region20
    $region19: #{basic_block_pallas.5} parent=5 // pred_region
      // Predicated region
      $region21: #{basic_block_pallas.5} parent=19 // pred_check
        %p130 = pneg %p29
      $region22: #{basic_block_pallas.5} parent=19 // pred_check_branch
        %132 = sbr.rel (%p130) target = $region24
      $region23: #{basic_block_pallas.5} parent=19 // pred_region
        %s133 = smul.u32 2, %s9
        %p134 = scmp.lt.s32.totalorder %s133, 3
        %s135 = scalar_select %p134, %s133, 3
        %s136 = smul.addr %s135, 2
        %s137 = smul.addr %s136, 4
        %s138 = scalar_lea.vmem %s0, %s137
        %s139 = smul.u32 2, %s9
      $region24: #{basic_block_pallas.5} parent=19 // pred_fallthru
        _
      // Predicated region
      $region25: #{basic_block_pallas.5} parent=19 // pred_check
        %p140 = pneg %p55
      $region26: #{basic_block_pallas.5} parent=19 // pred_check_branch
        %142 = sbr.rel (%p140) target = $region28
      $region27: #{basic_block_pallas.5} parent=19 // pred_region
        %s143 = smul.u32 2, %s9
        %p144 = scmp.lt.s32.totalorder %s143, 3
        %s145 = scalar_select %p144, %s143, 3
        %s146 = smul.addr %s145, 2
        %s147 = smul.addr %s146, 4
        %s148 = scalar_lea.vmem %s1, %s147
        %s149 = smul.u32 2, %s9
      $region28: #{basic_block_pallas.5} parent=19 // pred_fallthru
        _
    $region20: #{basic_block_pallas.5} parent=5 // pred_fallthru
      _
    %p150 = scmp.le.s32.totalorder 1, %s9
    %p151 = scmp.lt.s32.totalorder %s9, 3
    %p152 = pnand %p150, %p151
    %p153 = pneg %p152
    // Predicated region
    $region29: #{basic_block_pallas.5} parent=5 // pred_check
      _
    $region30: #{basic_block_pallas.5} parent=5 // pred_check_branch
      %155 = sbr.rel (%p152) target = $region32
    $region31: #{basic_block_pallas.5} parent=5 // pred_region
      %s156 = ssub.s32 %s9, 1
      %s157 = smul.u32 2, %s14
      %p158 = scmp.lt.s32.totalorder %s157, 3
      %s159 = scalar_select %p158, %s157, 3
      %s160 = smul.addr %s159, 2
      %s161 = smul.addr %s160, 4
      %s162 = scalar_lea.vmem %s0, %s161
      %p163 = pneg %p35
      %p164 = pneg %p32
      %s165 = smul.u32 2, %s14
      %p166 = scmp.lt.s32.totalorder %s165, 3
      %s167 = scalar_select %p166, %s165, 3
      %s168 = smul.addr %s167, 2
      %s169 = smul.addr %s168, 4
      %s170 = scalar_lea.vmem %s1, %s169
      %p171 = pneg %p61
      %p172 = pneg %p58
      %p173 = pneg %p82
      %p174 = pneg %p79
      %p175 = pneg %p108
      %p176 = pneg %p105
      %s177 = smul.u32 2, %s14
      %p178 = scmp.lt.s32.totalorder %s177, 3
      %s179 = scalar_select %p178, %s177, 3
      %s180 = smul.addr %s179, 2
      %s181 = smul.addr %s180, 8
      %s182 = scalar_lea.vmem %s3, %s181
      %s183 = smul.u32 2, %s14
      %p184 = scmp.lt.s32.totalorder %s183, 3
      %s185 = scalar_select %p184, %s183, 3
      %s186 = smul.addr %s185, 2
      %s187 = smul.addr %s186, 4
      %s188 = scalar_lea.vmem %s0, %s187
      %s189 = smul.u32 2, %s14
      %s190 = smul.u32 2, %s14
      %p191 = scmp.lt.s32.totalorder %s190, 3
      %s192 = scalar_select %p191, %s190, 3
      %s193 = smul.addr %s192, 2
      %s194 = smul.addr %s193, 4
      %s195 = scalar_lea.vmem %s1, %s194
      %s196 = smul.u32 2, %s14
      %s197 = smul.u32 2, %s14
      %p198 = scmp.lt.s32.totalorder %s197, 3
      %s199 = scalar_select %p198, %s197, 3
      %s200 = smul.addr %s199, 2
      %s201 = smul.addr %s200, 8
      %s202 = scalar_lea.vmem %s3, %s201
      %s203 = smul.u32 2, %s14
      %v204 = vld [vmem:[%s2] sm:$0xff]
      %v205 = vld [vmem:[%s2 + $0x8] sm:$0xff]
      %v206 = vld [vmem:[%s2 + $0x10] sm:$0xff]
      %v207 = vld [vmem:[%s188] sm:$0xff]
      %v208 = vunpack.c.l.bf16 %v207
      %v209 = vunpack.c.h.bf16 %v207
      %211 = vset.pattern.permute.xlu0 0
      %212 = vperm.xlu0 %211, %v204
      %v213 = vpop.permute.xlu0 %212
      %v215 = vmul.f32 %v208, %v213
      %v216 = vmul.f32 %v209, %v213
      %v217 = vld [vmem:[%s195] sm:$0xff]
      %v218 = vunpack.c.l.bf16 %v217
      %v219 = vunpack.c.h.bf16 %v217
      %221 = vset.pattern.permute.xlu0 0
      %222 = vperm.xlu0 %221, %v205
      %v223 = vpop.permute.xlu0 %222
      %v225 = vmul.f32 %v218, %v223
      %v226 = vmul.f32 %v219, %v223
      %v227 = vadd.f32 %v215, %v225
      %v228 = vadd.f32 %v216, %v226
      %230 = vset.pattern.permute.xlu0 0
      %231 = vperm.xlu0 %230, %v206
      %v232 = vpop.permute.xlu0 %231
      %v234 = vadd.f32 %v227, %v232
      %v235 = vadd.f32 %v228, %v232
      %v236 = vmax.f32 %v234, 0.0
      %v237 = vmax.f32 %v235, 0.0
      %238 = vst [vmem:[%s202] sm:$0xff] %v236
      %239 = vst [vmem:[%s202 + $0x8] sm:$0xff] %v237
      %s240 = scalar_lea.vmem %s188, 8
      %v241 = vld [vmem:[%s240] sm:$0xff]
      %v242 = vunpack.c.l.bf16 %v241
      %v243 = vunpack.c.h.bf16 %v241
      %v244 = vmul.f32 %v242, %v213
      %v245 = vmul.f32 %v243, %v213
      %s246 = scalar_lea.vmem %s195, 8
      %v247 = vld [vmem:[%s246] sm:$0xff]
      %v248 = vunpack.c.l.bf16 %v247
      %v249 = vunpack.c.h.bf16 %v247
      %v250 = vmul.f32 %v248, %v223
      %v251 = vmul.f32 %v249, %v223
      %v252 = vadd.f32 %v244, %v250
      %v253 = vadd.f32 %v245, %v251
      %v254 = vadd.f32 %v252, %v232
      %v255 = vadd.f32 %v253, %v232
      %v256 = vmax.f32 %v254, 0.0
      %v257 = vmax.f32 %v255, 0.0
      %s258 = scalar_lea.vmem %s202, 16
      %259 = vst [vmem:[%s258] sm:$0xff] %v256
      %260 = vst [vmem:[%s258 + $0x8] sm:$0xff] %v257
      %s261 = smul.u32 2, %s14
      %p262 = scmp.lt.s32.totalorder %s261, 3
      %s263 = scalar_select %p262, %s261, 3
      %s264 = smul.addr %s263, 2
      %s265 = smul.addr %s264, 8
      %s266 = scalar_lea.vmem %s3, %s265
      // Predicated region
      $region33: #{basic_block_pallas.5} parent=31 // pred_check
        %p267 = pneg %p105
      $region34: #{basic_block_pallas.5} parent=31 // pred_check_branch
        %269 = sbr.rel (%p267) target = $region36
      $region35: #{basic_block_pallas.5} parent=31 // pred_region
        %s270 = smul.u32 2, %s14
      $region36: #{basic_block_pallas.5} parent=31 // pred_fallthru
        _
    $region32: #{basic_block_pallas.5} parent=5 // pred_fallthru
      _
    %p271 = scmp.le.s32.totalorder 2, %s9
    // Predicated region
    $region37: #{basic_block_pallas.5} parent=5 // pred_check
      %p272 = pneg %p271
    $region38: #{basic_block_pallas.5} parent=5 // pred_check_branch
      %274 = sbr.rel (%p272) target = $region40
    $region39: #{basic_block_pallas.5} parent=5 // pred_region
      %s275 = ssub.s32 %s9, 2
      // Predicated region
      $region41: #{basic_block_pallas.5} parent=39 // pred_check
        %p276 = pneg %p111
      $region42: #{basic_block_pallas.5} parent=39 // pred_check_branch
        %278 = sbr.rel (%p276) target = $region44
      $region43: #{basic_block_pallas.5} parent=39 // pred_region
        %s279 = smul.u32 2, %s15
        %p280 = scmp.lt.s32.totalorder %s279, 3
        %s281 = scalar_select %p280, %s279, 3
        %s282 = smul.addr %s281, 2
        %s283 = smul.addr %s282, 8
        %s284 = scalar_lea.vmem %s3, %s283
      $region44: #{basic_block_pallas.5} parent=39 // pred_fallthru
        _
    $region40: #{basic_block_pallas.5} parent=5 // pred_fallthru
      _
  $region6: #{basic_block_pallas.5} parent=0 // loop_footer
    %s13 = sadd.s32 1, %s9
  $region7: #{basic_block_pallas.5} parent=0 // loop_footer_branch
    %8 = sbr.rel target = $region3
  $region8: #{basic_block_pallas.5} parent=0 // loop_exit
    _

// kernel: basic_block_pallas.4
$region0: #{basic_block_pallas.4}
  #allocation0 [shape = 'u32[]', space=smem, size = 0x4, offset = 0x4, fixed_abs, tag = 'smem constant byte address 0x4 - core index']
  #allocation1 [shape = 'u32[144,128]{1,0:T(1,128)}', space=vmem, size = 0x12000, scoped, tag = 'internal scratch']
  %s0 = inlined_call_operand.vmem [shape: bf16[4,8,256], index: 0, kind: input, shape index: {}]
  %s1 = inlined_call_operand.vmem [shape: f32[16,1], index: 1, kind: input, shape index: {}]
  %s2 = inlined_call_operand.vmem [shape: bf16[8,72], index: 2, kind: input, shape index: {}]
  %s3 = inlined_call_operand.vmem [shape: f32[72,256], index: 3, kind: input, shape index: {}]
  %s4 = inlined_call_operand.vmem [shape: bf16[4,8,256], index: 4, kind: output, shape index: {0}]
  %s5 = inlined_call_operand.vmem [shape: f32[2,16,1], index: 5, kind: output, shape index: {1}]
  %6 = xla_tuple %s4, %s5
  %s7 = sld [smem:[#allocation0]]
  $region57: #{basic_block_pallas.4} parent=0
    _
  %s9 = ssub.s32 1, %s7
  %s10 = scalar_select 0, %s9, %s7
  loop: start=0, step=1, limit=4
  $region2: #{basic_block_pallas.4} parent=0 // loop_pre_header
    _
  $region3: #{basic_block_pallas.4} parent=0 // loop_header
    %s12 = sphi 0, %s16
    %p13 = scmp.ge.s32.totalorder %s12, 4
    %s22 = sphi 0, %s24
    %s25 = sphi 0, %s22
    %s26 = sphi 0, %s25
    %s42 = sphi 0, %s26
    %s46 = sphi 0, %s46
    %s48 = sphi 0, %s46
    %s49 = sphi 0, %s48
    %s63 = sphi 0, %s49
    %s67 = sphi 0, %s67
    %s69 = sphi 0, %s67
    %s70 = sphi 0, %s69
    %s84 = sphi 0, %s70
    %s88 = sphi 0, %s88
    %s90 = sphi 0, %s88
    %s91 = sphi 0, %s90
    %s105 = sphi 0, %s91
    %s111 = sphi 0, %s113
    %s114 = sphi 0, %s111
    %s115 = sphi 0, %s114
    %s131 = sphi 0, %s115
    %s137 = sphi 0, %s139
    %s140 = sphi 0, %s137
    %s141 = sphi 0, %s140
    %s157 = sphi 0, %s141
  $region4: #{basic_block_pallas.4} parent=0 // loop_header_branch
    %15 = sbr.rel (%p13) target = $region8
  $region5: #{basic_block_pallas.4} parent=0 // loop_body
    %s17 = ssub.s32 %s12, 1
    %s18 = ssub.s32 %s12, 2
    %s19 = sadd.s32 %s12, 1
    %s20 = ssub.s32 %s12, %s19
    %p21 = scmp.eq.s32.totalorder %s20, 0
    %s23 = sadd.s32 %s22, 1
    %s24 = scalar_select %p21, %s22, %s23
    %p27 = pneg %p21
    %p28 = scmp.eq.s32.totalorder %s12, 1
    %p29 = por %p27, %p28
    %p30 = scmp.ne.s32.totalorder %s22, %s25
    %p31 = scmp.eq.s32.totalorder %s12, 0
    %p32 = por %p30, %p31
    %p33 = scmp.ne.s32.totalorder %s22, %s25
    %p34 = scmp.eq.s32.totalorder %s17, 1
    %p35 = por %p33, %p34
    %p36 = scmp.ne.s32.totalorder %s25, %s26
    %p37 = scmp.eq.s32.totalorder %s17, 0
    %p38 = por %p36, %p37
    %p39 = scmp.ne.s32.totalorder %s25, %s26
    %p40 = scmp.eq.s32.totalorder %s18, 1
    %p41 = por %p39, %p40
    %p43 = scmp.ne.s32.totalorder %s26, %s42
    %p44 = scmp.eq.s32.totalorder %s18, 0
    %p45 = por %p43, %p44
    %s47 = sadd.s32 %s46, 1
    %p50 = scmp.eq.s32.totalorder %s12, 1
    %p51 = scmp.ne.s32.totalorder %s46, %s48
    %p52 = scmp.eq.s32.totalorder %s12, 0
    %p53 = por %p51, %p52
    %p54 = scmp.ne.s32.totalorder %s46, %s48
    %p55 = scmp.eq.s32.totalorder %s17, 1
    %p56 = por %p54, %p55
    %p57 = scmp.ne.s32.totalorder %s48, %s49
    %p58 = scmp.eq.s32.totalorder %s17, 0
    %p59 = por %p57, %p58
    %p60 = scmp.ne.s32.totalorder %s48, %s49
    %p61 = scmp.eq.s32.totalorder %s18, 1
    %p62 = por %p60, %p61
    %p64 = scmp.ne.s32.totalorder %s49, %s63
    %p65 = scmp.eq.s32.totalorder %s18, 0
    %p66 = por %p64, %p65
    %s68 = sadd.s32 %s67, 1
    %p71 = scmp.eq.s32.totalorder %s12, 1
    %p72 = scmp.ne.s32.totalorder %s67, %s69
    %p73 = scmp.eq.s32.totalorder %s12, 0
    %p74 = por %p72, %p73
    %p75 = scmp.ne.s32.totalorder %s67, %s69
    %p76 = scmp.eq.s32.totalorder %s17, 1
    %p77 = por %p75, %p76
    %p78 = scmp.ne.s32.totalorder %s69, %s70
    %p79 = scmp.eq.s32.totalorder %s17, 0
    %p80 = por %p78, %p79
    %p81 = scmp.ne.s32.totalorder %s69, %s70
    %p82 = scmp.eq.s32.totalorder %s18, 1
    %p83 = por %p81, %p82
    %p85 = scmp.ne.s32.totalorder %s70, %s84
    %p86 = scmp.eq.s32.totalorder %s18, 0
    %p87 = por %p85, %p86
    %s89 = sadd.s32 %s88, 1
    %p92 = scmp.eq.s32.totalorder %s12, 1
    %p93 = scmp.ne.s32.totalorder %s88, %s90
    %p94 = scmp.eq.s32.totalorder %s12, 0
    %p95 = por %p93, %p94
    %p96 = scmp.ne.s32.totalorder %s88, %s90
    %p97 = scmp.eq.s32.totalorder %s17, 1
    %p98 = por %p96, %p97
    %p99 = scmp.ne.s32.totalorder %s90, %s91
    %p100 = scmp.eq.s32.totalorder %s17, 0
    %p101 = por %p99, %p100
    %p102 = scmp.ne.s32.totalorder %s90, %s91
    %p103 = scmp.eq.s32.totalorder %s18, 1
    %p104 = por %p102, %p103
    %p106 = scmp.ne.s32.totalorder %s91, %s105
    %p107 = scmp.eq.s32.totalorder %s18, 0
    %p108 = por %p106, %p107
    %s109 = ssub.s32 %s12, %s19
    %p110 = scmp.eq.s32.totalorder %s109, 0
    %s112 = sadd.s32 %s111, 1
    %s113 = scalar_select %p110, %s111, %s112
    %p116 = pneg %p110
    %p117 = scmp.eq.s32.totalorder %s12, 1
    %p118 = por %p116, %p117
    %p119 = scmp.ne.s32.totalorder %s111, %s114
    %p120 = scmp.eq.s32.totalorder %s12, 0
    %p121 = por %p119, %p120
    %p122 = scmp.ne.s32.totalorder %s111, %s114
    %p123 = scmp.eq.s32.totalorder %s17, 1
    %p124 = por %p122, %p123
    %p125 = scmp.ne.s32.totalorder %s114, %s115
    %p126 = scmp.eq.s32.totalorder %s17, 0
    %p127 = por %p125, %p126
    %p128 = scmp.ne.s32.totalorder %s114, %s115
    %p129 = scmp.eq.s32.totalorder %s18, 1
    %p130 = por %p128, %p129
    %p132 = scmp.ne.s32.totalorder %s115, %s131
    %p133 = scmp.eq.s32.totalorder %s18, 0
    %p134 = por %p132, %p133
    %s135 = ssub.s32 %s12, %s19
    %p136 = scmp.eq.s32.totalorder %s135, 0
    %s138 = sadd.s32 %s137, 1
    %s139 = scalar_select %p136, %s137, %s138
    %p142 = pneg %p136
    %p143 = scmp.eq.s32.totalorder %s12, 1
    %p144 = por %p142, %p143
    %p145 = scmp.ne.s32.totalorder %s137, %s140
    %p146 = scmp.eq.s32.totalorder %s12, 0
    %p147 = por %p145, %p146
    %p148 = scmp.ne.s32.totalorder %s137, %s140
    %p149 = scmp.eq.s32.totalorder %s17, 1
    %p150 = por %p148, %p149
    %p151 = scmp.ne.s32.totalorder %s140, %s141
    %p152 = scmp.eq.s32.totalorder %s17, 0
    %p153 = por %p151, %p152
    %p154 = scmp.ne.s32.totalorder %s140, %s141
    %p155 = scmp.eq.s32.totalorder %s18, 1
    %p156 = por %p154, %p155
    %p158 = scmp.ne.s32.totalorder %s141, %s157
    %p159 = scmp.eq.s32.totalorder %s18, 0
    %p160 = por %p158, %p159
    %p161 = scmp.le.s32.totalorder 1, %s12
    %p162 = scmp.lt.s32.totalorder %s12, 3
    %p163 = pnand %p161, %p162
    %p164 = pneg %p163
    // Predicated region
    $region9: #{basic_block_pallas.4} parent=5 // pred_check
      _
    $region10: #{basic_block_pallas.4} parent=5 // pred_check_branch
      %166 = sbr.rel (%p163) target = $region12
    $region11: #{basic_block_pallas.4} parent=5 // pred_region
      %s167 = ssub.s32 %s12, 1
      // Predicated region
      $region13: #{basic_block_pallas.4} parent=11 // pred_check
        %p168 = pneg %p59
      $region14: #{basic_block_pallas.4} parent=11 // pred_check_branch
        %170 = sbr.rel (%p168) target = $region16
      $region15: #{basic_block_pallas.4} parent=11 // pred_region
        _
      $region16: #{basic_block_pallas.4} parent=11 // pred_fallthru
        _
      // Predicated region
      $region17: #{basic_block_pallas.4} parent=11 // pred_check
        %p171 = pneg %p80
      $region18: #{basic_block_pallas.4} parent=11 // pred_check_branch
        %173 = sbr.rel (%p171) target = $region20
      $region19: #{basic_block_pallas.4} parent=11 // pred_region
        _
      $region20: #{basic_block_pallas.4} parent=11 // pred_fallthru
        _
      // Predicated region
      $region21: #{basic_block_pallas.4} parent=11 // pred_check
        %p174 = pneg %p101
      $region22: #{basic_block_pallas.4} parent=11 // pred_check_branch
        %176 = sbr.rel (%p174) target = $region24
      $region23: #{basic_block_pallas.4} parent=11 // pred_region
        _
      $region24: #{basic_block_pallas.4} parent=11 // pred_fallthru
        _
    $region12: #{basic_block_pallas.4} parent=5 // pred_fallthru
      _
    %p177 = scmp.lt.s32.totalorder %s12, 2
    // Predicated region
    $region25: #{basic_block_pallas.4} parent=5 // pred_check
      %p178 = pneg %p177
    $region26: #{basic_block_pallas.4} parent=5 // pred_check_branch
      %180 = sbr.rel (%p178) target = $region28
    $region27: #{basic_block_pallas.4} parent=5 // pred_region
      // Predicated region
      $region29: #{basic_block_pallas.4} parent=27 // pred_check
        %p181 = pneg %p32
      $region30: #{basic_block_pallas.4} parent=27 // pred_check_branch
        %183 = sbr.rel (%p181) target = $region32
      $region31: #{basic_block_pallas.4} parent=27 // pred_region
        %s184 = smul.u32 2, %s12
        %p185 = scmp.lt.s32.totalorder %s184, 3
        %s186 = scalar_select %p185, %s184, 3
        %s187 = smul.addr %s186, 2
        %s188 = smul.addr %s187, 4
        %s189 = scalar_lea.vmem %s0, %s188
        %s190 = smul.u32 2, %s12
      $region32: #{basic_block_pallas.4} parent=27 // pred_fallthru
        _
    $region28: #{basic_block_pallas.4} parent=5 // pred_fallthru
      _
    %p191 = scmp.le.s32.totalorder 1, %s12
    %p192 = scmp.lt.s32.totalorder %s12, 3
    %p193 = pnand %p191, %p192
    %p194 = pneg %p193
    // Predicated region
    $region33: #{basic_block_pallas.4} parent=5 // pred_check
      _
    $region34: #{basic_block_pallas.4} parent=5 // pred_check_branch
      %196 = sbr.rel (%p193) target = $region36
    $region35: #{basic_block_pallas.4} parent=5 // pred_region
      %s197 = ssub.s32 %s12, 1
      %s198 = smul.u32 2, %s17
      %p199 = scmp.lt.s32.totalorder %s198, 3
      %s200 = scalar_select %p199, %s198, 3
      %s201 = smul.addr %s200, 2
      %s202 = smul.addr %s201, 4
      %s203 = scalar_lea.vmem %s0, %s202
      %p204 = pneg %p38
      %p205 = pneg %p35
      %p206 = pneg %p59
      %p207 = pneg %p56
      %p208 = pneg %p80
      %p209 = pneg %p77
      %p210 = pneg %p101
      %p211 = pneg %p98
      %p212 = pneg %p127
      %p213 = pneg %p124
      %s214 = smul.u32 2, %s17
      %p215 = scmp.lt.s32.totalorder %s214, 3
      %s216 = scalar_select %p215, %s214, 3
      %s217 = smul.addr %s216, 2
      %s218 = smul.addr %s217, 4
      %s219 = scalar_lea.vmem %s4, %s218
      %p220 = pneg %p153
      %p221 = pneg %p150
      %p222 = scmp.lt.s32.totalorder %s17, 1
      %s223 = scalar_select %p222, %s17, 1
      %s224 = smul.addr %s223, 2
      %s225 = smul.addr %s224, 8
      %s226 = scalar_lea.vmem %s5, %s225
      %s227 = smul.u32 2, %s17
      %p228 = scmp.lt.s32.totalorder %s227, 3
      %s229 = scalar_select %p228, %s227, 3
      %s230 = smul.addr %s229, 2
      %s231 = smul.addr %s230, 4
      %s232 = scalar_lea.vmem %s0, %s231
      %s233 = smul.u32 2, %s17
      %s234 = smul.u32 2, %s17
      %p235 = scmp.lt.s32.totalorder %s234, 3
      %s236 = scalar_select %p235, %s234, 3
      %s237 = smul.addr %s236, 2
      %s238 = smul.addr %s237, 4
      %s239 = scalar_lea.vmem %s4, %s238
      %s240 = smul.u32 2, %s17
      %p241 = scmp.lt.s32.totalorder %s17, 1
      %s242 = scalar_select %p241, %s17, 1
      %s243 = smul.addr %s242, 2
      %s244 = smul.addr %s243, 8
      %s245 = scalar_lea.vmem %s5, %s244
      %v247 = vld [vmem:[%s1] sm:$0xff]
      %v248 = vld [vmem:[%s1 + $0x8] sm:$0xff]
      %v249 = vld [vmem:[%s2] sm:$0xf]
      %v250 = vld [vmem:[%s3] sm:$0xff]
      %v251 = vld [vmem:[%s3 + $0x8] sm:$0xff]
      %v252 = vld [vmem:[%s3 + $0x10] sm:$0xff]
      %v253 = vld [vmem:[%s3 + $0x18] sm:$0xff]
      %v254 = vld [vmem:[%s3 + $0x20] sm:$0xff]
      %v255 = vld [vmem:[%s3 + $0x28] sm:$0xff]
      %v256 = vld [vmem:[%s3 + $0x30] sm:$0xff]
      %v257 = vld [vmem:[%s3 + $0x38] sm:$0xff]
      %v258 = vld [vmem:[%s3 + $0x40] sm:$0xff]
      %v259 = vld [vmem:[%s3 + $0x48] sm:$0xff]
      %v260 = vld [vmem:[%s3 + $0x50] sm:$0xff]
      %v261 = vld [vmem:[%s3 + $0x58] sm:$0xff]
      %v262 = vld [vmem:[%s3 + $0x60] sm:$0xff]
      %v263 = vld [vmem:[%s3 + $0x68] sm:$0xff]
      %v264 = vld [vmem:[%s3 + $0x70] sm:$0xff]
      %v265 = vld [vmem:[%s3 + $0x78] sm:$0xff]
      %v266 = vld [vmem:[%s3 + $0x80] sm:$0xff]
      %v267 = vld [vmem:[%s3 + $0x88] sm:$0xff]
      %v268 = vld [vmem:[%s232] sm:$0xff]
      %v269 = vunpack.c.l.bf16 %v268
      %v270 = vunpack.c.h.bf16 %v268
      %272 = vset.pattern.permute.xlu0 0
      %273 = vperm.xlu0 %272, %v247
      %v274 = vpop.permute.xlu0 %273
      %v276 = vmul.f32 %v269, %v274
      %v277 = vmul.f32 %v270, %v274
      %279 = vset.pattern.permute.xlu0 0
      %280 = vperm.xlu0 %279, %v248
      %v281 = vpop.permute.xlu0 %280
      %v283 = vadd.f32 %v276, %v281
      %v284 = vadd.f32 %v277, %v281
      %v285 = vmax.f32 %v283, 0.0
      %v286 = vmax.f32 %v284, 0.0
      %287 = vrot.lane.b32.xlu0 %v285, 17
      %v288 = vpop.permute.xlu0 %287
      %289 = vrot.lane.b32.xlu0 %v286, 17
      %v290 = vpop.permute.xlu0 %289
      %v291 = vlaneseq
      %v292 = vand.u32 %v291, 127
      %vm293 = vcmp.lt.s32.totalorder %v292, 17
      %v294 = vsel %vm293, %v288, %v290
      %v295 = vsel %vm293, %v290, %v288
      %296 = vrot.lane.b32.xlu0 %v285, 16
      %v297 = vpop.permute.xlu0 %296
      %298 = vrot.lane.b32.xlu0 %v286, 16
      %v299 = vpop.permute.xlu0 %298
      %vm300 = vcmp.lt.s32.totalorder %v292, 16
      %v301 = vsel %vm300, %v297, %v299
      %v302 = vsel %vm300, %v299, %v297
      %303 = vrot.lane.b32.xlu0 %v285, 15
      %v304 = vpop.permute.xlu0 %303
      %305 = vrot.lane.b32.xlu0 %v286, 15
      %v306 = vpop.permute.xlu0 %305
      %vm307 = vcmp.lt.s32.totalorder %v292, 15
      %v308 = vsel %vm307, %v304, %v306
      %v309 = vsel %vm307, %v306, %v304
      %310 = vrot.lane.b32.xlu0 %v285, 1
      %v311 = vpop.permute.xlu0 %310
      %312 = vrot.lane.b32.xlu0 %v286, 1
      %v313 = vpop.permute.xlu0 %312
      %vm314 = vcmp.lt.s32.totalorder %v292, 1
      %v315 = vsel %vm314, %v311, %v313
      %v316 = vsel %vm314, %v313, %v311
      %317 = vrot.lane.b32.xlu0 %v285, 127
      %v318 = vpop.permute.xlu0 %317
      %319 = vrot.lane.b32.xlu0 %v286, 127
      %v320 = vpop.permute.xlu0 %319
      %vm321 = vcmp.lt.s32.totalorder %v292, 127
      %v322 = vsel %vm321, %v318, %v320
      %v323 = vsel %vm321, %v320, %v318
      %324 = vrot.lane.b32.xlu0 %v285, 113
      %v325 = vpop.permute.xlu0 %324
      %326 = vrot.lane.b32.xlu0 %v286, 113
      %v327 = vpop.permute.xlu0 %326
      %vm328 = vcmp.lt.s32.totalorder %v292, 113
      %v329 = vsel %vm328, %v325, %v327
      %v330 = vsel %vm328, %v327, %v325
      %331 = vrot.lane.b32.xlu0 %v285, 112
      %v332 = vpop.permute.xlu0 %331
      %333 = vrot.lane.b32.xlu0 %v286, 112
      %v334 = vpop.permute.xlu0 %333
      %vm335 = vcmp.lt.s32.totalorder %v292, 112
      %v336 = vsel %vm335, %v332, %v334
      %v337 = vsel %vm335, %v334, %v332
      %338 = vrot.lane.b32.xlu0 %v285, 111
      %v339 = vpop.permute.xlu0 %338
      %340 = vrot.lane.b32.xlu0 %v286, 111
      %v341 = vpop.permute.xlu0 %340
      %vm342 = vcmp.lt.s32.totalorder %v292, 111
      %v343 = vsel %vm342, %v339, %v341
      %v344 = vsel %vm342, %v341, %v339
      %v345 = vmul.f32 %v295, %v250
      %v346 = vmul.f32 %v294, %v251
      %v347 = vmul.f32 %v302, %v252
      %v348 = vmul.f32 %v301, %v253
      %v349 = vmul.f32 %v309, %v254
      %v350 = vmul.f32 %v308, %v255
      %v351 = vmul.f32 %v316, %v256
      %v352 = vmul.f32 %v315, %v257
      %v353 = vmul.f32 %v285, %v258
      %v354 = vmul.f32 %v286, %v259
      %v355 = vmul.f32 %v322, %v260
      %v356 = vmul.f32 %v323, %v261
      %v357 = vmul.f32 %v329, %v262
      %v358 = vmul.f32 %v330, %v263
      %v359 = vmul.f32 %v336, %v264
      %v360 = vmul.f32 %v337, %v265
      %v361 = vmul.f32 %v343, %v266
      %v362 = vmul.f32 %v344, %v267
      %v363 = vpack.c.bf16 %v347, %v345
      %v364 = vpack.c.bf16 %v348, %v346
      %v365 = vpack.c.bf16 %v351, %v349
      %v366 = vpack.c.bf16 %v352, %v350
      %v367 = vpack.c.bf16 %v355, %v353
      %v368 = vpack.c.bf16 %v356, %v354
      %v369 = vpack.c.bf16 %v359, %v357
      %v370 = vpack.c.bf16 %v360, %v358
      %v371 = vpack.c.bf16 %v361, %v361
      %v372 = vpack.c.bf16 %v362, %v362
      %vm373 = vcmask 588800
      %v375 = vsel %vm373, %v249, 0
      %vm377 = vcmask 1043456
      %v379 = vsel %vm377, %v371, 0
      %v382 = vsel %vm377, %v372, 0
      %384 = vmatprep.subr.bf16.mxu0 0
      %385 = vmatpush1.bf16.msra.mxu0 0
      %386 = vmatprep.subr.bf16.mxu0 0
      %387 = vmatpush1.bf16.msra.mxu0 0
      %388 = vmatprep.subr.bf16.mxu0 0
      %389 = vmatpush1.bf16.msra.mxu0 0
      %390 = vmatprep.subr.bf16.mxu0 %v382
      %391 = vmatpush1.bf16.msra.mxu0 %v379
      %392 = vmatprep.subr.bf16.mxu0 %v370
      %393 = vmatpush1.bf16.msra.mxu0 %v369
      %394 = vmatprep.subr.bf16.mxu0 %v368
      %395 = vmatpush1.bf16.msra.mxu0 %v367
      %396 = vmatprep.subr.bf16.mxu0 %v366
      %397 = vmatpush1.bf16.msra.mxu0 %v365
      %398 = vmatprep.subr.bf16.mxu0 %v364
      %399 = vmatpush1.bf16.msra.mxu0 %v363
      %400 = vmatprep.subr.bf16.mxu0 0
      %401 = vmatpush2.bf16.msra.mxu0 0
      %402 = vmatprep.subr.bf16.mxu0 0
      %403 = vmatpush2.bf16.msra.mxu0 0
      %404 = vmatprep.subr.bf16.mxu0 0
      %405 = vmatpush2.bf16.msra.mxu0 0
      %406 = vmatprep.subr.bf16.mxu0 0
      %407 = vmatpush2.bf16.msra.mxu0 0
      %408 = vmatprep.subr.bf16.mxu0 0
      %409 = vmatpush2.bf16.msra.mxu0 0
      %410 = vmatprep.subr.bf16.mxu0 0
      %411 = vmatpush2.bf16.msra.mxu0 0
      %412 = vmatprep.subr.bf16.mxu0 0
      %413 = vmatpush2.bf16.msra.mxu0 0
      %414 = vmatprep.subr.bf16.mxu0 0
      %415 = vmatpush2.bf16.msra.mxu0 0
      %416 = vmatprep.mubr.bf16.mxu0 0
      %417 = vmatmul.mubr.bf16.gmra.mxu0 %v375
      %v418 = vpop.f32.mrf.mxu0
      %v419 = vadd.f32 0.0, %v418
      %v420 = vpop.f32.mrf.mxu0
      %v421 = vadd.f32 0.0, %v420
      %v422 = vpop.f32.mrf.mxu0
      %v423 = vpop.f32.mrf.mxu0
      %424 = vdwg.mxu0
      %v425 = vmul.f32 %v419, %v419
      %v426 = vmul.f32 %v421, %v421
      %v427 = vpack.c.bf16 %v419, %v419
      %v428 = vpack.c.bf16 %v421, %v421
      %v431 = vunpack.c.l.b16 %v427
      %v432 = vunpack.c.l.b16 %v428
      %v433 = vpack.c.b16 %v432, %v431
      %435 = vst [vmem:[%s239] sm:$0xff] %v433
      %s436 = scalar_lea.vmem %s232, 8
      %v437 = vld [vmem:[%s436] sm:$0xff]
      %v438 = vunpack.c.l.bf16 %v437
      %v439 = vunpack.c.h.bf16 %v437
      %v440 = vmul.f32 %v438, %v274
      %v441 = vmul.f32 %v439, %v274
      %v442 = vadd.f32 %v440, %v281
      %v443 = vadd.f32 %v441, %v281
      %v444 = vmax.f32 %v442, 0.0
      %v445 = vmax.f32 %v443, 0.0
      %446 = vrot.lane.b32.xlu0 %v444, 17
      %v447 = vpop.permute.xlu0 %446
      %448 = vrot.lane.b32.xlu0 %v445, 17
      %v449 = vpop.permute.xlu0 %448
      %v450 = vsel %vm293, %v447, %v449
      %v451 = vsel %vm293, %v449, %v447
      %452 = vrot.lane.b32.xlu0 %v444, 16
      %v453 = vpop.permute.xlu0 %452
      %454 = vrot.lane.b32.xlu0 %v445, 16
      %v455 = vpop.permute.xlu0 %454
      %v456 = vsel %vm300, %v453, %v455
      %v457 = vsel %vm300, %v455, %v453
      %458 = vrot.lane.b32.xlu0 %v444, 15
      %v459 = vpop.permute.xlu0 %458
      %460 = vrot.lane.b32.xlu0 %v445, 15
      %v461 = vpop.permute.xlu0 %460
      %v462 = vsel %vm307, %v459, %v461
      %v463 = vsel %vm307, %v461, %v459
      %464 = vrot.lane.b32.xlu0 %v444, 1
      %v465 = vpop.permute.xlu0 %464
      %466 = vrot.lane.b32.xlu0 %v445, 1
      %v467 = vpop.permute.xlu0 %466
      %v468 = vsel %vm314, %v465, %v467
      %v469 = vsel %vm314, %v467, %v465
      %470 = vrot.lane.b32.xlu0 %v444, 127
      %v471 = vpop.permute.xlu0 %470
      %472 = vrot.lane.b32.xlu0 %v445, 127
      %v473 = vpop.permute.xlu0 %472
      %v474 = vsel %vm321, %v471, %v473
      %v475 = vsel %vm321, %v473, %v471
      %476 = vrot.lane.b32.xlu0 %v444, 113
      %v477 = vpop.permute.xlu0 %476
      %478 = vrot.lane.b32.xlu0 %v445, 113
      %v479 = vpop.permute.xlu0 %478
      %v480 = vsel %vm328, %v477, %v479
      %v481 = vsel %vm328, %v479, %v477
      %482 = vrot.lane.b32.xlu0 %v444, 112
      %v483 = vpop.permute.xlu0 %482
      %484 = vrot.lane.b32.xlu0 %v445, 112
      %v485 = vpop.permute.xlu0 %484
      %v486 = vsel %vm335, %v483, %v485
      %v487 = vsel %vm335, %v485, %v483
      %488 = vrot.lane.b32.xlu0 %v444, 111
      %v489 = vpop.permute.xlu0 %488
      %490 = vrot.lane.b32.xlu0 %v445, 111
      %v491 = vpop.permute.xlu0 %490
      %v492 = vsel %vm342, %v489, %v491
      %v493 = vsel %vm342, %v491, %v489
      %v494 = vmul.f32 %v451, %v250
      %v495 = vmul.f32 %v450, %v251
      %v496 = vmul.f32 %v457, %v252
      %v497 = vmul.f32 %v456, %v253
      %v498 = vmul.f32 %v463, %v254
      %v499 = vmul.f32 %v462, %v255
      %v500 = vmul.f32 %v469, %v256
      %v501 = vmul.f32 %v468, %v257
      %v502 = vmul.f32 %v444, %v258
      %v503 = vmul.f32 %v445, %v259
      %v504 = vmul.f32 %v474, %v260
      %v505 = vmul.f32 %v475, %v261
      %v506 = vmul.f32 %v480, %v262
      %v507 = vmul.f32 %v481, %v263
      %v508 = vmul.f32 %v486, %v264
      %v509 = vmul.f32 %v487, %v265
      %v510 = vmul.f32 %v492, %v266
      %v511 = vmul.f32 %v493, %v267
      %v512 = vpack.c.bf16 %v496, %v494
      %v513 = vpack.c.bf16 %v497, %v495
      %v514 = vpack.c.bf16 %v500, %v498
      %v515 = vpack.c.bf16 %v501, %v499
      %v516 = vpack.c.bf16 %v504, %v502
      %v517 = vpack.c.bf16 %v505, %v503
      %v518 = vpack.c.bf16 %v508, %v506
      %v519 = vpack.c.bf16 %v509, %v507
      %v520 = vpack.c.bf16 %v510, %v510
      %v521 = vpack.c.bf16 %v511, %v511
      %v523 = vsel %vm377, %v520, 0
      %v526 = vsel %vm377, %v521, 0
      %528 = vmatprep.subr.bf16.mxu0 0
      %529 = vmatpush1.bf16.msra.mxu0 0
      %530 = vmatprep.subr.bf16.mxu0 0
      %531 = vmatpush1.bf16.msra.mxu0 0
      %532 = vmatprep.subr.bf16.mxu0 0
      %533 = vmatpush1.bf16.msra.mxu0 0
      %534 = vmatprep.subr.bf16.mxu0 %v526
      %535 = vmatpush1.bf16.msra.mxu0 %v523
      %536 = vmatprep.subr.bf16.mxu0 %v519
      %537 = vmatpush1.bf16.msra.mxu0 %v518
      %538 = vmatprep.subr.bf16.mxu0 %v517
      %539 = vmatpush1.bf16.msra.mxu0 %v516
      %540 = vmatprep.subr.bf16.mxu0 %v515
      %541 = vmatpush1.bf16.msra.mxu0 %v514
      %542 = vmatprep.subr.bf16.mxu0 %v513
      %543 = vmatpush1.bf16.msra.mxu0 %v512
      %544 = vmatprep.subr.bf16.mxu0 0
      %545 = vmatpush2.bf16.msra.mxu0 0
      %546 = vmatprep.subr.bf16.mxu0 0
      %547 = vmatpush2.bf16.msra.mxu0 0
      %548 = vmatprep.subr.bf16.mxu0 0
      %549 = vmatpush2.bf16.msra.mxu0 0
      %550 = vmatprep.subr.bf16.mxu0 0
      %551 = vmatpush2.bf16.msra.mxu0 0
      %552 = vmatprep.subr.bf16.mxu0 0
      %553 = vmatpush2.bf16.msra.mxu0 0
      %554 = vmatprep.subr.bf16.mxu0 0
      %555 = vmatpush2.bf16.msra.mxu0 0
      %556 = vmatprep.subr.bf16.mxu0 0
      %557 = vmatpush2.bf16.msra.mxu0 0
      %558 = vmatprep.subr.bf16.mxu0 0
      %559 = vmatpush2.bf16.msra.mxu0 0
      %560 = vmatprep.mubr.bf16.mxu0 0
      %561 = vmatmul.mubr.bf16.gmra.mxu0 %v375
      %v562 = vpop.f32.mrf.mxu0
      %v563 = vadd.f32 0.0, %v562
      %v564 = vpop.f32.mrf.mxu0
      %v565 = vadd.f32 0.0, %v564
      %v566 = vpop.f32.mrf.mxu0
      %v567 = vpop.f32.mrf.mxu0
      %568 = vdwg.mxu0
      %v569 = vmul.f32 %v563, %v563
      %v570 = vmul.f32 %v565, %v565
      %571 = vmatprep.subr.mxu0 0.0
      %572 = vmatpush1.msra.mxu0 1.0
      %573 = vmatprep.subr.mxu0 0.0
      %574 = vmatpush1.msra.mxu0 1.0
      %575 = vmatprep.subr.mxu0 0.0
      %576 = vmatpush1.msra.mxu0 1.0
      %577 = vmatprep.subr.mxu0 0.0
      %578 = vmatpush1.msra.mxu0 1.0
      %579 = vmatprep.subr.mxu0 0.0
      %580 = vmatpush1.msra.mxu0 1.0
      %581 = vmatprep.subr.mxu0 0.0
      %582 = vmatpush1.msra.mxu0 1.0
      %583 = vmatprep.subr.mxu0 0.0
      %584 = vmatpush1.msra.mxu0 1.0
      %585 = vmatprep.subr.mxu0 0.0
      %586 = vmatpush1.msra.mxu0 1.0
      %587 = vmatprep.subr.mxu0 0.0
      %588 = vmatpush1.msra.mxu0 1.0
      %589 = vmatprep.subr.mxu0 0.0
      %590 = vmatpush1.msra.mxu0 1.0
      %591 = vmatprep.subr.mxu0 0.0
      %592 = vmatpush1.msra.mxu0 1.0
      %593 = vmatprep.subr.mxu0 0.0
      %594 = vmatpush1.msra.mxu0 1.0
      %595 = vmatprep.subr.mxu0 0.0
      %596 = vmatpush1.msra.mxu0 1.0
      %597 = vmatprep.subr.mxu0 0.0
      %598 = vmatpush1.msra.mxu0 1.0
      %599 = vmatprep.subr.mxu0 0.0
      %600 = vmatpush1.msra.mxu0 1.0
      %601 = vmatprep.subr.mxu0 0.0
      %602 = vmatpush1.msra.mxu0 1.0
      %603 = vmatprep.subr.mxu0 0.0
      %604 = vmatpush2.msra.mxu0 1.0
      %605 = vmatprep.subr.mxu0 0.0
      %606 = vmatpush2.msra.mxu0 1.0
      %607 = vmatprep.subr.mxu0 0.0
      %608 = vmatpush2.msra.mxu0 1.0
      %609 = vmatprep.subr.mxu0 0.0
      %610 = vmatpush2.msra.mxu0 1.0
      %611 = vmatprep.subr.mxu0 0.0
      %612 = vmatpush2.msra.mxu0 1.0
      %613 = vmatprep.subr.mxu0 0.0
      %614 = vmatpush2.msra.mxu0 1.0
      %615 = vmatprep.subr.mxu0 0.0
      %616 = vmatpush2.msra.mxu0 1.0
      %617 = vmatprep.subr.mxu0 0.0
      %618 = vmatpush2.msra.mxu0 1.0
      %619 = vmatprep.subr.mxu0 0.0
      %620 = vmatpush2.msra.mxu0 1.0
      %621 = vmatprep.subr.mxu0 0.0
      %622 = vmatpush2.msra.mxu0 1.0
      %623 = vmatprep.subr.mxu0 0.0
      %624 = vmatpush2.msra.mxu0 1.0
      %625 = vmatprep.subr.mxu0 0.0
      %626 = vmatpush2.msra.mxu0 1.0
      %627 = vmatprep.subr.mxu0 0.0
      %628 = vmatpush2.msra.mxu0 1.0
      %629 = vmatprep.subr.mxu0 0.0
      %630 = vmatpush2.msra.mxu0 1.0
      %631 = vmatprep.subr.mxu0 0.0
      %632 = vmatpush2.msra.mxu0 1.0
      %633 = vmatprep.subr.mxu0 0.0
      %634 = vmatpush2.msra.mxu0 1.0
      %635 = vmatprep.mubr.f32.mxu0 %v565
      %636 = vmatmul.mubr.f32.gmra.mxu0 %v563
      %v637 = vpop.f32.mrf.mxu0
      %v638 = vadd.f32 0.0, %v637
      %v639 = vpop.f32.mrf.mxu0
      %640 = vmatprep.mubr.f32.mxu0 %v570
      %641 = vmatmul.mubr.f32.gmra.mxu0 %v569
      %v642 = vpop.f32.mrf.mxu0
      %v643 = vadd.f32 0.0, %v642
      %v644 = vpop.f32.mrf.mxu0
      %645 = vdwg.mxu0
      %646 = vmatprep.subr.mxu0 0.0
      %647 = vmatpush1.msra.mxu0 1.0
      %648 = vmatprep.subr.mxu0 0.0
      %649 = vmatpush1.msra.mxu0 1.0
      %650 = vmatprep.subr.mxu0 0.0
      %651 = vmatpush1.msra.mxu0 1.0
      %652 = vmatprep.subr.mxu0 0.0
      %653 = vmatpush1.msra.mxu0 1.0
      %654 = vmatprep.subr.mxu0 0.0
      %655 = vmatpush1.msra.mxu0 1.0
      %656 = vmatprep.subr.mxu0 0.0
      %657 = vmatpush1.msra.mxu0 1.0
      %658 = vmatprep.subr.mxu0 0.0
      %659 = vmatpush1.msra.mxu0 1.0
      %660 = vmatprep.subr.mxu0 0.0
      %661 = vmatpush1.msra.mxu0 1.0
      %662 = vmatprep.subr.mxu0 0.0
      %663 = vmatpush1.msra.mxu0 1.0
      %664 = vmatprep.subr.mxu0 0.0
      %665 = vmatpush1.msra.mxu0 1.0
      %666 = vmatprep.subr.mxu0 0.0
      %667 = vmatpush1.msra.mxu0 1.0
      %668 = vmatprep.subr.mxu0 0.0
      %669 = vmatpush1.msra.mxu0 1.0
      %670 = vmatprep.subr.mxu0 0.0
      %671 = vmatpush1.msra.mxu0 1.0
      %672 = vmatprep.subr.mxu0 0.0
      %673 = vmatpush1.msra.mxu0 1.0
      %674 = vmatprep.subr.mxu0 0.0
      %675 = vmatpush1.msra.mxu0 1.0
      %676 = vmatprep.subr.mxu0 0.0
      %677 = vmatpush1.msra.mxu0 1.0
      %678 = vmatprep.subr.mxu0 0.0
      %679 = vmatpush2.msra.mxu0 1.0
      %680 = vmatprep.subr.mxu0 0.0
      %681 = vmatpush2.msra.mxu0 1.0
      %682 = vmatprep.subr.mxu0 0.0
      %683 = vmatpush2.msra.mxu0 1.0
      %684 = vmatprep.subr.mxu0 0.0
      %685 = vmatpush2.msra.mxu0 1.0
      %686 = vmatprep.subr.mxu0 0.0
      %687 = vmatpush2.msra.mxu0 1.0
      %688 = vmatprep.subr.mxu0 0.0
      %689 = vmatpush2.msra.mxu0 1.0
      %690 = vmatprep.subr.mxu0 0.0
      %691 = vmatpush2.msra.mxu0 1.0
      %692 = vmatprep.subr.mxu0 0.0
      %693 = vmatpush2.msra.mxu0 1.0
      %694 = vmatprep.subr.mxu0 0.0
      %695 = vmatpush2.msra.mxu0 1.0
      %696 = vmatprep.subr.mxu0 0.0
      %697 = vmatpush2.msra.mxu0 1.0
      %698 = vmatprep.subr.mxu0 0.0
      %699 = vmatpush2.msra.mxu0 1.0
      %700 = vmatprep.subr.mxu0 0.0
      %701 = vmatpush2.msra.mxu0 1.0
      %702 = vmatprep.subr.mxu0 0.0
      %703 = vmatpush2.msra.mxu0 1.0
      %704 = vmatprep.subr.mxu0 0.0
      %705 = vmatpush2.msra.mxu0 1.0
      %706 = vmatprep.subr.mxu0 0.0
      %707 = vmatpush2.msra.mxu0 1.0
      %708 = vmatprep.subr.mxu0 0.0
      %709 = vmatpush2.msra.mxu0 1.0
      %710 = vmatprep.mubr.f32.mxu0 %v421
      %711 = vmatmul.mubr.f32.gmra.mxu0 %v419
      %v712 = vpop.f32.mrf.mxu0
      %v713 = vadd.f32 %v638, %v712
      %v714 = vpop.f32.mrf.mxu0
      %715 = vmatprep.mubr.f32.mxu0 %v426
      %716 = vmatmul.mubr.f32.gmra.mxu0 %v425
      %v717 = vpop.f32.mrf.mxu0
      %v718 = vadd.f32 %v643, %v717
      %v719 = vpop.f32.mrf.mxu0
      %720 = vdwg.mxu0
      %v721 = vpack.c.bf16 %v563, %v563
      %v722 = vpack.c.bf16 %v565, %v565
      %v725 = vunpack.c.l.b16 %v721
      %v726 = vunpack.c.l.b16 %v722
      %v727 = vpack.c.b16 %v726, %v725
      %s729 = scalar_lea.vmem %s239, 8
      %730 = vst [vmem:[%s729] sm:$0xff] %v727
      %vm731 = vcmask 7168
      %732 = vst.msk [vmem:[%s245] sm:$0xff] %vm731, %v713
      %733 = vst.msk [vmem:[%s245 + $0x8] sm:$0xff] %vm731, %v718
      %s734 = smul.u32 2, %s17
      %p735 = scmp.lt.s32.totalorder %s734, 3
      %s736 = scalar_select %p735, %s734, 3
      %s737 = smul.addr %s736, 2
      %s738 = smul.addr %s737, 4
      %s739 = scalar_lea.vmem %s4, %s738
      %p740 = scmp.lt.s32.totalorder %s17, 1
      %s741 = scalar_select %p740, %s17, 1
      %s742 = smul.addr %s741, 2
      %s743 = smul.addr %s742, 8
      %s744 = scalar_lea.vmem %s5, %s743
      // Predicated region
      $region37: #{basic_block_pallas.4} parent=35 // pred_check
        %p745 = pneg %p124
      $region38: #{basic_block_pallas.4} parent=35 // pred_check_branch
        %747 = sbr.rel (%p745) target = $region40
      $region39: #{basic_block_pallas.4} parent=35 // pred_region
        %s748 = smul.u32 2, %s17
      $region40: #{basic_block_pallas.4} parent=35 // pred_fallthru
        _
      // Predicated region
      $region41: #{basic_block_pallas.4} parent=35 // pred_check
        %p749 = pneg %p150
      $region42: #{basic_block_pallas.4} parent=35 // pred_check_branch
        %751 = sbr.rel (%p749) target = $region44
      $region43: #{basic_block_pallas.4} parent=35 // pred_region
        _
      $region44: #{basic_block_pallas.4} parent=35 // pred_fallthru
        _
    $region36: #{basic_block_pallas.4} parent=5 // pred_fallthru
      _
    %p752 = scmp.le.s32.totalorder 2, %s12
    // Predicated region
    $region45: #{basic_block_pallas.4} parent=5 // pred_check
      %p753 = pneg %p752
    $region46: #{basic_block_pallas.4} parent=5 // pred_check_branch
      %755 = sbr.rel (%p753) target = $region48
    $region47: #{basic_block_pallas.4} parent=5 // pred_region
      %s756 = ssub.s32 %s12, 2
      // Predicated region
      $region49: #{basic_block_pallas.4} parent=47 // pred_check
        %p757 = pneg %p130
      $region50: #{basic_block_pallas.4} parent=47 // pred_check_branch
        %759 = sbr.rel (%p757) target = $region52
      $region51: #{basic_block_pallas.4} parent=47 // pred_region
        %s760 = smul.u32 2, %s18
        %p761 = scmp.lt.s32.totalorder %s760, 3
        %s762 = scalar_select %p761, %s760, 3
        %s763 = smul.addr %s762, 2
        %s764 = smul.addr %s763, 4
        %s765 = scalar_lea.vmem %s4, %s764
      $region52: #{basic_block_pallas.4} parent=47 // pred_fallthru
        _
      // Predicated region
      $region53: #{basic_block_pallas.4} parent=47 // pred_check
        %p766 = pneg %p156
      $region54: #{basic_block_pallas.4} parent=47 // pred_check_branch
        %768 = sbr.rel (%p766) target = $region56
      $region55: #{basic_block_pallas.4} parent=47 // pred_region
        %p769 = scmp.lt.s32.totalorder %s18, 1
        %s770 = scalar_select %p769, %s18, 1
        %s771 = smul.addr %s770, 2
        %s772 = smul.addr %s771, 8
        %s773 = scalar_lea.vmem %s5, %s772
      $region56: #{basic_block_pallas.4} parent=47 // pred_fallthru
        _
    $region48: #{basic_block_pallas.4} parent=5 // pred_fallthru
      _
  $region6: #{basic_block_pallas.4} parent=0 // loop_footer
    %s16 = sadd.s32 1, %s12
  $region7: #{basic_block_pallas.4} parent=0 // loop_footer_branch
    %11 = sbr.rel target = $region3
  $region8: #{basic_block_pallas.4} parent=0 // loop_exit
    _

// kernel: basic_block_pallas.3
$region0: #{basic_block_pallas.3}
  #allocation0 [shape = 'u32[]', space=smem, size = 0x4, offset = 0x4, fixed_abs, tag = 'smem constant byte address 0x4 - core index']
  #allocation1 [shape = 'u32[144,128]{1,0:T(1,128)}', space=vmem, size = 0x12000, scoped, tag = 'internal scratch']
  %s0 = inlined_call_operand.vmem [shape: f32[4,4,256], index: 0, kind: input, shape index: {}]
  %s1 = inlined_call_operand.vmem [shape: bf16[16,36], index: 1, kind: input, shape index: {}]
  %s2 = inlined_call_operand.vmem [shape: f32[36,256], index: 2, kind: input, shape index: {}]
  %s3 = inlined_call_operand.vmem [shape: bf16[4,8,256], index: 3, kind: output, shape index: {0}]
  %s4 = inlined_call_operand.vmem [shape: bf16[4,8,256], index: 4, kind: output, shape index: {1}]
  %s5 = inlined_call_operand.vmem [shape: f32[2,32,1], index: 5, kind: output, shape index: {2}]
  %6 = xla_tuple %s3, %s4, %s5
  %s7 = sld [smem:[#allocation0]]
  $region61: #{basic_block_pallas.3} parent=0
    _
  %s9 = ssub.s32 1, %s7
  %s10 = scalar_select 0, %s9, %s7
  loop: start=0, step=1, limit=4
  $region2: #{basic_block_pallas.3} parent=0 // loop_pre_header
    _
  $region3: #{basic_block_pallas.3} parent=0 // loop_header
    %s12 = sphi 0, %s16
    %p13 = scmp.ge.s32.totalorder %s12, 4
    %s22 = sphi 0, %s24
    %s25 = sphi 0, %s22
    %s26 = sphi 0, %s25
    %s42 = sphi 0, %s26
    %s46 = sphi 0, %s46
    %s48 = sphi 0, %s46
    %s49 = sphi 0, %s48
    %s63 = sphi 0, %s49
    %s67 = sphi 0, %s67
    %s69 = sphi 0, %s67
    %s70 = sphi 0, %s69
    %s84 = sphi 0, %s70
    %s90 = sphi 0, %s92
    %s93 = sphi 0, %s90
    %s94 = sphi 0, %s93
    %s110 = sphi 0, %s94
    %s116 = sphi 0, %s118
    %s119 = sphi 0, %s116
    %s120 = sphi 0, %s119
    %s136 = sphi 0, %s120
    %s142 = sphi 0, %s144
    %s145 = sphi 0, %s142
    %s146 = sphi 0, %s145
    %s162 = sphi 0, %s146
  $region4: #{basic_block_pallas.3} parent=0 // loop_header_branch
    %15 = sbr.rel (%p13) target = $region8
  $region5: #{basic_block_pallas.3} parent=0 // loop_body
    %s17 = ssub.s32 %s12, 1
    %s18 = ssub.s32 %s12, 2
    %s19 = sadd.s32 %s12, 1
    %s20 = ssub.s32 %s12, %s19
    %p21 = scmp.eq.s32.totalorder %s20, 0
    %s23 = sadd.s32 %s22, 1
    %s24 = scalar_select %p21, %s22, %s23
    %p27 = pneg %p21
    %p28 = scmp.eq.s32.totalorder %s12, 1
    %p29 = por %p27, %p28
    %p30 = scmp.ne.s32.totalorder %s22, %s25
    %p31 = scmp.eq.s32.totalorder %s12, 0
    %p32 = por %p30, %p31
    %p33 = scmp.ne.s32.totalorder %s22, %s25
    %p34 = scmp.eq.s32.totalorder %s17, 1
    %p35 = por %p33, %p34
    %p36 = scmp.ne.s32.totalorder %s25, %s26
    %p37 = scmp.eq.s32.totalorder %s17, 0
    %p38 = por %p36, %p37
    %p39 = scmp.ne.s32.totalorder %s25, %s26
    %p40 = scmp.eq.s32.totalorder %s18, 1
    %p41 = por %p39, %p40
    %p43 = scmp.ne.s32.totalorder %s26, %s42
    %p44 = scmp.eq.s32.totalorder %s18, 0
    %p45 = por %p43, %p44
    %s47 = sadd.s32 %s46, 1
    %p50 = scmp.eq.s32.totalorder %s12, 1
    %p51 = scmp.ne.s32.totalorder %s46, %s48
    %p52 = scmp.eq.s32.totalorder %s12, 0
    %p53 = por %p51, %p52
    %p54 = scmp.ne.s32.totalorder %s46, %s48
    %p55 = scmp.eq.s32.totalorder %s17, 1
    %p56 = por %p54, %p55
    %p57 = scmp.ne.s32.totalorder %s48, %s49
    %p58 = scmp.eq.s32.totalorder %s17, 0
    %p59 = por %p57, %p58
    %p60 = scmp.ne.s32.totalorder %s48, %s49
    %p61 = scmp.eq.s32.totalorder %s18, 1
    %p62 = por %p60, %p61
    %p64 = scmp.ne.s32.totalorder %s49, %s63
    %p65 = scmp.eq.s32.totalorder %s18, 0
    %p66 = por %p64, %p65
    %s68 = sadd.s32 %s67, 1
    %p71 = scmp.eq.s32.totalorder %s12, 1
    %p72 = scmp.ne.s32.totalorder %s67, %s69
    %p73 = scmp.eq.s32.totalorder %s12, 0
    %p74 = por %p72, %p73
    %p75 = scmp.ne.s32.totalorder %s67, %s69
    %p76 = scmp.eq.s32.totalorder %s17, 1
    %p77 = por %p75, %p76
    %p78 = scmp.ne.s32.totalorder %s69, %s70
    %p79 = scmp.eq.s32.totalorder %s17, 0
    %p80 = por %p78, %p79
    %p81 = scmp.ne.s32.totalorder %s69, %s70
    %p82 = scmp.eq.s32.totalorder %s18, 1
    %p83 = por %p81, %p82
    %p85 = scmp.ne.s32.totalorder %s70, %s84
    %p86 = scmp.eq.s32.totalorder %s18, 0
    %p87 = por %p85, %p86
    %s88 = ssub.s32 %s12, %s19
    %p89 = scmp.eq.s32.totalorder %s88, 0
    %s91 = sadd.s32 %s90, 1
    %s92 = scalar_select %p89, %s90, %s91
    %p95 = pneg %p89
    %p96 = scmp.eq.s32.totalorder %s12, 1
    %p97 = por %p95, %p96
    %p98 = scmp.ne.s32.totalorder %s90, %s93
    %p99 = scmp.eq.s32.totalorder %s12, 0
    %p100 = por %p98, %p99
    %p101 = scmp.ne.s32.totalorder %s90, %s93
    %p102 = scmp.eq.s32.totalorder %s17, 1
    %p103 = por %p101, %p102
    %p104 = scmp.ne.s32.totalorder %s93, %s94
    %p105 = scmp.eq.s32.totalorder %s17, 0
    %p106 = por %p104, %p105
    %p107 = scmp.ne.s32.totalorder %s93, %s94
    %p108 = scmp.eq.s32.totalorder %s18, 1
    %p109 = por %p107, %p108
    %p111 = scmp.ne.s32.totalorder %s94, %s110
    %p112 = scmp.eq.s32.totalorder %s18, 0
    %p113 = por %p111, %p112
    %s114 = ssub.s32 %s12, %s19
    %p115 = scmp.eq.s32.totalorder %s114, 0
    %s117 = sadd.s32 %s116, 1
    %s118 = scalar_select %p115, %s116, %s117
    %p121 = pneg %p115
    %p122 = scmp.eq.s32.totalorder %s12, 1
    %p123 = por %p121, %p122
    %p124 = scmp.ne.s32.totalorder %s116, %s119
    %p125 = scmp.eq.s32.totalorder %s12, 0
    %p126 = por %p124, %p125
    %p127 = scmp.ne.s32.totalorder %s116, %s119
    %p128 = scmp.eq.s32.totalorder %s17, 1
    %p129 = por %p127, %p128
    %p130 = scmp.ne.s32.totalorder %s119, %s120
    %p131 = scmp.eq.s32.totalorder %s17, 0
    %p132 = por %p130, %p131
    %p133 = scmp.ne.s32.totalorder %s119, %s120
    %p134 = scmp.eq.s32.totalorder %s18, 1
    %p135 = por %p133, %p134
    %p137 = scmp.ne.s32.totalorder %s120, %s136
    %p138 = scmp.eq.s32.totalorder %s18, 0
    %p139 = por %p137, %p138
    %s140 = ssub.s32 %s12, %s19
    %p141 = scmp.eq.s32.totalorder %s140, 0
    %s143 = sadd.s32 %s142, 1
    %s144 = scalar_select %p141, %s142, %s143
    %p147 = pneg %p141
    %p148 = scmp.eq.s32.totalorder %s12, 1
    %p149 = por %p147, %p148
    %p150 = scmp.ne.s32.totalorder %s142, %s145
    %p151 = scmp.eq.s32.totalorder %s12, 0
    %p152 = por %p150, %p151
    %p153 = scmp.ne.s32.totalorder %s142, %s145
    %p154 = scmp.eq.s32.totalorder %s17, 1
    %p155 = por %p153, %p154
    %p156 = scmp.ne.s32.totalorder %s145, %s146
    %p157 = scmp.eq.s32.totalorder %s17, 0
    %p158 = por %p156, %p157
    %p159 = scmp.ne.s32.totalorder %s145, %s146
    %p160 = scmp.eq.s32.totalorder %s18, 1
    %p161 = por %p159, %p160
    %p163 = scmp.ne.s32.totalorder %s146, %s162
    %p164 = scmp.eq.s32.totalorder %s18, 0
    %p165 = por %p163, %p164
    %p166 = scmp.le.s32.totalorder 1, %s12
    %p167 = scmp.lt.s32.totalorder %s12, 3
    %p168 = pnand %p166, %p167
    %p169 = pneg %p168
    // Predicated region
    $region9: #{basic_block_pallas.3} parent=5 // pred_check
      _
    $region10: #{basic_block_pallas.3} parent=5 // pred_check_branch
      %171 = sbr.rel (%p168) target = $region12
    $region11: #{basic_block_pallas.3} parent=5 // pred_region
      %s172 = ssub.s32 %s12, 1
      // Predicated region
      $region13: #{basic_block_pallas.3} parent=11 // pred_check
        %p173 = pneg %p59
      $region14: #{basic_block_pallas.3} parent=11 // pred_check_branch
        %175 = sbr.rel (%p173) target = $region16
      $region15: #{basic_block_pallas.3} parent=11 // pred_region
        _
      $region16: #{basic_block_pallas.3} parent=11 // pred_fallthru
        _
      // Predicated region
      $region17: #{basic_block_pallas.3} parent=11 // pred_check
        %p176 = pneg %p80
      $region18: #{basic_block_pallas.3} parent=11 // pred_check_branch
        %178 = sbr.rel (%p176) target = $region20
      $region19: #{basic_block_pallas.3} parent=11 // pred_region
        _
      $region20: #{basic_block_pallas.3} parent=11 // pred_fallthru
        _
    $region12: #{basic_block_pallas.3} parent=5 // pred_fallthru
      _
    %p179 = scmp.lt.s32.totalorder %s12, 2
    // Predicated region
    $region21: #{basic_block_pallas.3} parent=5 // pred_check
      %p180 = pneg %p179
    $region22: #{basic_block_pallas.3} parent=5 // pred_check_branch
      %182 = sbr.rel (%p180) target = $region24
    $region23: #{basic_block_pallas.3} parent=5 // pred_region
      // Predicated region
      $region25: #{basic_block_pallas.3} parent=23 // pred_check
        %p183 = pneg %p32
      $region26: #{basic_block_pallas.3} parent=23 // pred_check_branch
        %185 = sbr.rel (%p183) target = $region28
      $region27: #{basic_block_pallas.3} parent=23 // pred_region
        %s186 = smul.u32 2, %s12
        %p187 = scmp.lt.s32.totalorder %s186, 3
        %s188 = scalar_select %p187, %s186, 3
        %s189 = smul.addr %s188, 2
        %s190 = smul.addr %s189, 4
        %s191 = scalar_lea.vmem %s0, %s190
        %s192 = smul.u32 2, %s12
      $region28: #{basic_block_pallas.3} parent=23 // pred_fallthru
        _
    $region24: #{basic_block_pallas.3} parent=5 // pred_fallthru
      _
    %p193 = scmp.le.s32.totalorder 1, %s12
    %p194 = scmp.lt.s32.totalorder %s12, 3
    %p195 = pnand %p193, %p194
    %p196 = pneg %p195
    // Predicated region
    $region29: #{basic_block_pallas.3} parent=5 // pred_check
      _
    $region30: #{basic_block_pallas.3} parent=5 // pred_check_branch
      %198 = sbr.rel (%p195) target = $region32
    $region31: #{basic_block_pallas.3} parent=5 // pred_region
      %s199 = ssub.s32 %s12, 1
      %s200 = smul.u32 2, %s17
      %p201 = scmp.lt.s32.totalorder %s200, 3
      %s202 = scalar_select %p201, %s200, 3
      %s203 = smul.addr %s202, 2
      %s204 = smul.addr %s203, 4
      %s205 = scalar_lea.vmem %s0, %s204
      %p206 = pneg %p38
      %p207 = pneg %p35
      %p208 = pneg %p59
      %p209 = pneg %p56
      %p210 = pneg %p80
      %p211 = pneg %p77
      %p212 = pneg %p106
      %p213 = pneg %p103
      %s214 = smul.u32 2, %s17
      %p215 = scmp.lt.s32.totalorder %s214, 3
      %s216 = scalar_select %p215, %s214, 3
      %s217 = smul.addr %s216, 2
      %s218 = smul.addr %s217, 4
      %s219 = scalar_lea.vmem %s3, %s218
      %p220 = pneg %p132
      %p221 = pneg %p129
      %s222 = smul.u32 2, %s17
      %p223 = scmp.lt.s32.totalorder %s222, 3
      %s224 = scalar_select %p223, %s222, 3
      %s225 = smul.addr %s224, 2
      %s226 = smul.addr %s225, 4
      %s227 = scalar_lea.vmem %s4, %s226
      %p228 = pneg %p158
      %p229 = pneg %p155
      %p230 = scmp.lt.s32.totalorder %s17, 1
      %s231 = scalar_select %p230, %s17, 1
      %s232 = smul.addr %s231, 4
      %s233 = smul.addr %s232, 8
      %s234 = scalar_lea.vmem %s5, %s233
      %s235 = smul.u32 2, %s17
      %p236 = scmp.lt.s32.totalorder %s235, 3
      %s237 = scalar_select %p236, %s235, 3
      %s238 = smul.addr %s237, 2
      %s239 = smul.addr %s238, 4
      %s240 = scalar_lea.vmem %s0, %s239
      %s241 = smul.u32 2, %s17
      %s242 = smul.u32 2, %s17
      %p243 = scmp.lt.s32.totalorder %s242, 3
      %s244 = scalar_select %p243, %s242, 3
      %s245 = smul.addr %s244, 2
      %s246 = smul.addr %s245, 4
      %s247 = scalar_lea.vmem %s3, %s246
      %s248 = smul.u32 2, %s17
      %s249 = smul.u32 2, %s17
      %p250 = scmp.lt.s32.totalorder %s249, 3
      %s251 = scalar_select %p250, %s249, 3
      %s252 = smul.addr %s251, 2
      %s253 = smul.addr %s252, 4
      %s254 = scalar_lea.vmem %s4, %s253
      %s255 = smul.u32 2, %s17
      %p256 = scmp.lt.s32.totalorder %s17, 1
      %s257 = scalar_select %p256, %s17, 1
      %s258 = smul.addr %s257, 4
      %s259 = smul.addr %s258, 8
      %s260 = scalar_lea.vmem %s5, %s259
      %v262 = vld [vmem:[%s1] sm:$0xf]
      %v263 = vld [vmem:[%s1 + $0x4] sm:$0xf]
      %v264 = vld [vmem:[%s2] sm:$0xff]
      %v265 = vld [vmem:[%s2 + $0x8] sm:$0xff]
      %v266 = vld [vmem:[%s2 + $0x10] sm:$0xff]
      %v267 = vld [vmem:[%s2 + $0x18] sm:$0xff]
      %v268 = vld [vmem:[%s2 + $0x20] sm:$0xff]
      %v269 = vld [vmem:[%s2 + $0x28] sm:$0xff]
      %v270 = vld [vmem:[%s2 + $0x30] sm:$0xff]
      %v271 = vld [vmem:[%s2 + $0x38] sm:$0xff]
      %v272 = vld [vmem:[%s2 + $0x40] sm:$0xf]
      %v273 = vld [vmem:[%s2 + $0x48] sm:$0xf]
      %v274 = vld [vmem:[%s240] sm:$0xff]
      %v276 = vcombine.high %v274, %v274
      %278 = vrot.lane.b32.xlu0 %v274, 17
      %v279 = vpop.permute.xlu0 %278
      %280 = vrot.lane.b32.xlu0 %v276, 17
      %v281 = vpop.permute.xlu0 %280
      %v282 = vlaneseq
      %v283 = vand.u32 %v282, 127
      %vm284 = vcmp.lt.s32.totalorder %v283, 17
      %v285 = vsel %vm284, %v279, %v281
      %v286 = vsel %vm284, %v281, %v279
      %287 = vrot.lane.b32.xlu0 %v274, 16
      %v288 = vpop.permute.xlu0 %287
      %289 = vrot.lane.b32.xlu0 %v276, 16
      %v290 = vpop.permute.xlu0 %289
      %vm291 = vcmp.lt.s32.totalorder %v283, 16
      %v292 = vsel %vm291, %v288, %v290
      %v293 = vsel %vm291, %v290, %v288
      %294 = vrot.lane.b32.xlu0 %v274, 15
      %v295 = vpop.permute.xlu0 %294
      %296 = vrot.lane.b32.xlu0 %v276, 15
      %v297 = vpop.permute.xlu0 %296
      %vm298 = vcmp.lt.s32.totalorder %v283, 15
      %v299 = vsel %vm298, %v295, %v297
      %v300 = vsel %vm298, %v297, %v295
      %301 = vrot.lane.b32.xlu0 %v274, 1
      %v302 = vpop.permute.xlu0 %301
      %303 = vrot.lane.b32.xlu0 %v276, 1
      %v304 = vpop.permute.xlu0 %303
      %vm305 = vcmp.lt.s32.totalorder %v283, 1
      %v306 = vsel %vm305, %v302, %v304
      %v307 = vsel %vm305, %v304, %v302
      %308 = vrot.lane.b32.xlu0 %v274, 127
      %v309 = vpop.permute.xlu0 %308
      %310 = vrot.lane.b32.xlu0 %v276, 127
      %v311 = vpop.permute.xlu0 %310
      %vm312 = vcmp.lt.s32.totalorder %v283, 127
      %v313 = vsel %vm312, %v309, %v311
      %v314 = vsel %vm312, %v311, %v309
      %315 = vrot.lane.b32.xlu0 %v274, 113
      %v316 = vpop.permute.xlu0 %315
      %317 = vrot.lane.b32.xlu0 %v276, 113
      %v318 = vpop.permute.xlu0 %317
      %vm319 = vcmp.lt.s32.totalorder %v283, 113
      %v320 = vsel %vm319, %v316, %v318
      %v321 = vsel %vm319, %v318, %v316
      %322 = vrot.lane.b32.xlu0 %v274, 112
      %v323 = vpop.permute.xlu0 %322
      %324 = vrot.lane.b32.xlu0 %v276, 112
      %v325 = vpop.permute.xlu0 %324
      %vm326 = vcmp.lt.s32.totalorder %v283, 112
      %v327 = vsel %vm326, %v323, %v325
      %v328 = vsel %vm326, %v325, %v323
      %329 = vrot.lane.b32.xlu0 %v274, 111
      %v330 = vpop.permute.xlu0 %329
      %331 = vrot.lane.b32.xlu0 %v276, 111
      %v332 = vpop.permute.xlu0 %331
      %vm333 = vcmp.lt.s32.totalorder %v283, 111
      %v334 = vsel %vm333, %v330, %v332
      %v335 = vsel %vm333, %v332, %v330
      %v338 = vrot.slane %v293, 4
      %v339 = vrot.slane %v292, 4
      %v344 = vrot.slane %v307, 4
      %v345 = vrot.slane %v306, 4
      %v350 = vrot.slane %v313, 4
      %v351 = vrot.slane %v314, 4
      %v356 = vrot.slane %v327, 4
      %v357 = vrot.slane %v328, 4
      %vm360 = vcmask 1043456
      %v361 = vsel %vm360, %v286, %v338
      %v362 = vsel %vm360, %v285, %v339
      %v363 = vsel %vm360, %v300, %v344
      %v364 = vsel %vm360, %v299, %v345
      %v365 = vsel %vm360, %v274, %v350
      %v366 = vsel %vm360, %v276, %v351
      %v367 = vsel %vm360, %v320, %v356
      %v368 = vsel %vm360, %v321, %v357
      %v369 = vmul.f32 %v361, %v264
      %v370 = vmul.f32 %v362, %v265
      %v371 = vmul.f32 %v363, %v266
      %v372 = vmul.f32 %v364, %v267
      %v373 = vmul.f32 %v365, %v268
      %v374 = vmul.f32 %v366, %v269
      %v375 = vmul.f32 %v367, %v270
      %v376 = vmul.f32 %v368, %v271
      %v377 = vmul.f32 %v334, %v272
      %v378 = vmul.f32 %v335, %v273
      %v379 = vpack.c.bf16 %v371, %v369
      %v380 = vpack.c.bf16 %v372, %v370
      %v381 = vpack.c.bf16 %v375, %v373
      %v382 = vpack.c.bf16 %v376, %v374
      %v383 = vpack.c.bf16 %v377, %v377
      %v384 = vpack.c.bf16 %v378, %v378
      %v387 = vunpack.c.l.b16 %v262
      %v388 = vunpack.c.l.b16 %v263
      %v389 = vpack.c.b16 %v388, %v387
      %vm390 = vcmask 293888
      %v392 = vsel %vm390, %v389, 0
      %vm394 = vcmask 1041408
      %v396 = vsel %vm394, %v383, 0
      %v399 = vsel %vm394, %v384, 0
      %401 = vmatprep.subr.bf16.mxu0 0
      %402 = vmatpush1.bf16.msra.mxu0 0
      %403 = vmatprep.subr.bf16.mxu0 0
      %404 = vmatpush1.bf16.msra.mxu0 0
      %405 = vmatprep.subr.bf16.mxu0 0
      %406 = vmatpush1.bf16.msra.mxu0 0
      %407 = vmatprep.subr.bf16.mxu0 0
      %408 = vmatpush1.bf16.msra.mxu0 0
      %409 = vmatprep.subr.bf16.mxu0 0
      %410 = vmatpush1.bf16.msra.mxu0 0
      %411 = vmatprep.subr.bf16.mxu0 %v399
      %412 = vmatpush1.bf16.msra.mxu0 %v396
      %413 = vmatprep.subr.bf16.mxu0 %v382
      %414 = vmatpush1.bf16.msra.mxu0 %v381
      %415 = vmatprep.subr.bf16.mxu0 %v380
      %416 = vmatpush1.bf16.msra.mxu0 %v379
      %417 = vmatprep.subr.bf16.mxu0 0
      %418 = vmatpush2.bf16.msra.mxu0 0
      %419 = vmatprep.subr.bf16.mxu0 0
      %420 = vmatpush2.bf16.msra.mxu0 0
      %421 = vmatprep.subr.bf16.mxu0 0
      %422 = vmatpush2.bf16.msra.mxu0 0
      %423 = vmatprep.subr.bf16.mxu0 0
      %424 = vmatpush2.bf16.msra.mxu0 0
      %425 = vmatprep.subr.bf16.mxu0 0
      %426 = vmatpush2.bf16.msra.mxu0 0
      %427 = vmatprep.subr.bf16.mxu0 0
      %428 = vmatpush2.bf16.msra.mxu0 0
      %429 = vmatprep.subr.bf16.mxu0 0
      %430 = vmatpush2.bf16.msra.mxu0 0
      %431 = vmatprep.subr.bf16.mxu0 0
      %432 = vmatpush2.bf16.msra.mxu0 0
      %433 = vmatprep.mubr.bf16.mxu0 0
      %434 = vmatmul.mubr.bf16.gmra.mxu0 %v392
      %v435 = vpop.f32.mrf.mxu0
      %v436 = vadd.f32 0.0, %v435
      %v437 = vpop.f32.mrf.mxu0
      %v438 = vadd.f32 0.0, %v437
      %v439 = vpop.f32.mrf.mxu0
      %v440 = vadd.f32 0.0, %v439
      %v441 = vpop.f32.mrf.mxu0
      %v442 = vadd.f32 0.0, %v441
      %443 = vdwg.mxu0
      %v444 = vmul.f32 %v436, %v436
      %v445 = vmul.f32 %v438, %v438
      %v446 = vmul.f32 %v440, %v440
      %v447 = vmul.f32 %v442, %v442
      %v448 = vpack.c.bf16 %v436, %v436
      %v449 = vpack.c.bf16 %v438, %v438
      %v452 = vunpack.c.l.b16 %v448
      %v453 = vunpack.c.l.b16 %v449
      %v454 = vpack.c.b16 %v453, %v452
      %456 = vst [vmem:[%s247] sm:$0xff] %v454
      %v457 = vpack.c.bf16 %v440, %v440
      %v458 = vpack.c.bf16 %v442, %v442
      %v461 = vunpack.c.l.b16 %v457
      %v462 = vunpack.c.l.b16 %v458
      %v463 = vpack.c.b16 %v462, %v461
      %465 = vst [vmem:[%s254] sm:$0xff] %v463
      %s466 = scalar_lea.vmem %s240, 8
      %v467 = vld [vmem:[%s466] sm:$0xff]
      %v469 = vcombine.high %v467, %v467
      %471 = vrot.lane.b32.xlu0 %v467, 17
      %v472 = vpop.permute.xlu0 %471
      %473 = vrot.lane.b32.xlu0 %v469, 17
      %v474 = vpop.permute.xlu0 %473
      %v475 = vsel %vm284, %v472, %v474
      %v476 = vsel %vm284, %v474, %v472
      %477 = vrot.lane.b32.xlu0 %v467, 16
      %v478 = vpop.permute.xlu0 %477
      %479 = vrot.lane.b32.xlu0 %v469, 16
      %v480 = vpop.permute.xlu0 %479
      %v481 = vsel %vm291, %v478, %v480
      %v482 = vsel %vm291, %v480, %v478
      %483 = vrot.lane.b32.xlu0 %v467, 15
      %v484 = vpop.permute.xlu0 %483
      %485 = vrot.lane.b32.xlu0 %v469, 15
      %v486 = vpop.permute.xlu0 %485
      %v487 = vsel %vm298, %v484, %v486
      %v488 = vsel %vm298, %v486, %v484
      %489 = vrot.lane.b32.xlu0 %v467, 1
      %v490 = vpop.permute.xlu0 %489
      %491 = vrot.lane.b32.xlu0 %v469, 1
      %v492 = vpop.permute.xlu0 %491
      %v493 = vsel %vm305, %v490, %v492
      %v494 = vsel %vm305, %v492, %v490
      %495 = vrot.lane.b32.xlu0 %v467, 127
      %v496 = vpop.permute.xlu0 %495
      %497 = vrot.lane.b32.xlu0 %v469, 127
      %v498 = vpop.permute.xlu0 %497
      %v499 = vsel %vm312, %v496, %v498
      %v500 = vsel %vm312, %v498, %v496
      %501 = vrot.lane.b32.xlu0 %v467, 113
      %v502 = vpop.permute.xlu0 %501
      %503 = vrot.lane.b32.xlu0 %v469, 113
      %v504 = vpop.permute.xlu0 %503
      %v505 = vsel %vm319, %v502, %v504
      %v506 = vsel %vm319, %v504, %v502
      %507 = vrot.lane.b32.xlu0 %v467, 112
      %v508 = vpop.permute.xlu0 %507
      %509 = vrot.lane.b32.xlu0 %v469, 112
      %v510 = vpop.permute.xlu0 %509
      %v511 = vsel %vm326, %v508, %v510
      %v512 = vsel %vm326, %v510, %v508
      %513 = vrot.lane.b32.xlu0 %v467, 111
      %v514 = vpop.permute.xlu0 %513
      %515 = vrot.lane.b32.xlu0 %v469, 111
      %v516 = vpop.permute.xlu0 %515
      %v517 = vsel %vm333, %v514, %v516
      %v518 = vsel %vm333, %v516, %v514
      %v521 = vrot.slane %v482, 4
      %v522 = vrot.slane %v481, 4
      %v527 = vrot.slane %v494, 4
      %v528 = vrot.slane %v493, 4
      %v533 = vrot.slane %v499, 4
      %v534 = vrot.slane %v500, 4
      %v539 = vrot.slane %v511, 4
      %v540 = vrot.slane %v512, 4
      %v543 = vsel %vm360, %v476, %v521
      %v544 = vsel %vm360, %v475, %v522
      %v545 = vsel %vm360, %v488, %v527
      %v546 = vsel %vm360, %v487, %v528
      %v547 = vsel %vm360, %v467, %v533
      %v548 = vsel %vm360, %v469, %v534
      %v549 = vsel %vm360, %v505, %v539
      %v550 = vsel %vm360, %v506, %v540
      %v551 = vmul.f32 %v543, %v264
      %v552 = vmul.f32 %v544, %v265
      %v553 = vmul.f32 %v545, %v266
      %v554 = vmul.f32 %v546, %v267
      %v555 = vmul.f32 %v547, %v268
      %v556 = vmul.f32 %v548, %v269
      %v557 = vmul.f32 %v549, %v270
      %v558 = vmul.f32 %v550, %v271
      %v559 = vmul.f32 %v517, %v272
      %v560 = vmul.f32 %v518, %v273
      %v561 = vpack.c.bf16 %v553, %v551
      %v562 = vpack.c.bf16 %v554, %v552
      %v563 = vpack.c.bf16 %v557, %v555
      %v564 = vpack.c.bf16 %v558, %v556
      %v565 = vpack.c.bf16 %v559, %v559
      %v566 = vpack.c.bf16 %v560, %v560
      %v568 = vsel %vm394, %v565, 0
      %v571 = vsel %vm394, %v566, 0
      %573 = vmatprep.subr.bf16.mxu0 0
      %574 = vmatpush1.bf16.msra.mxu0 0
      %575 = vmatprep.subr.bf16.mxu0 0
      %576 = vmatpush1.bf16.msra.mxu0 0
      %577 = vmatprep.subr.bf16.mxu0 0
      %578 = vmatpush1.bf16.msra.mxu0 0
      %579 = vmatprep.subr.bf16.mxu0 0
      %580 = vmatpush1.bf16.msra.mxu0 0
      %581 = vmatprep.subr.bf16.mxu0 0
      %582 = vmatpush1.bf16.msra.mxu0 0
      %583 = vmatprep.subr.bf16.mxu0 %v571
      %584 = vmatpush1.bf16.msra.mxu0 %v568
      %585 = vmatprep.subr.bf16.mxu0 %v564
      %586 = vmatpush1.bf16.msra.mxu0 %v563
      %587 = vmatprep.subr.bf16.mxu0 %v562
      %588 = vmatpush1.bf16.msra.mxu0 %v561
      %589 = vmatprep.subr.bf16.mxu0 0
      %590 = vmatpush2.bf16.msra.mxu0 0
      %591 = vmatprep.subr.bf16.mxu0 0
      %592 = vmatpush2.bf16.msra.mxu0 0
      %593 = vmatprep.subr.bf16.mxu0 0
      %594 = vmatpush2.bf16.msra.mxu0 0
      %595 = vmatprep.subr.bf16.mxu0 0
      %596 = vmatpush2.bf16.msra.mxu0 0
      %597 = vmatprep.subr.bf16.mxu0 0
      %598 = vmatpush2.bf16.msra.mxu0 0
      %599 = vmatprep.subr.bf16.mxu0 0
      %600 = vmatpush2.bf16.msra.mxu0 0
      %601 = vmatprep.subr.bf16.mxu0 0
      %602 = vmatpush2.bf16.msra.mxu0 0
      %603 = vmatprep.subr.bf16.mxu0 0
      %604 = vmatpush2.bf16.msra.mxu0 0
      %605 = vmatprep.mubr.bf16.mxu0 0
      %606 = vmatmul.mubr.bf16.gmra.mxu0 %v392
      %v607 = vpop.f32.mrf.mxu0
      %v608 = vadd.f32 0.0, %v607
      %v609 = vpop.f32.mrf.mxu0
      %v610 = vadd.f32 0.0, %v609
      %v611 = vpop.f32.mrf.mxu0
      %v612 = vadd.f32 0.0, %v611
      %v613 = vpop.f32.mrf.mxu0
      %v614 = vadd.f32 0.0, %v613
      %615 = vdwg.mxu0
      %v616 = vmul.f32 %v608, %v608
      %v617 = vmul.f32 %v610, %v610
      %v618 = vmul.f32 %v612, %v612
      %v619 = vmul.f32 %v614, %v614
      %620 = vmatprep.subr.mxu0 0.0
      %621 = vmatpush1.msra.mxu0 1.0
      %622 = vmatprep.subr.mxu0 0.0
      %623 = vmatpush1.msra.mxu0 1.0
      %624 = vmatprep.subr.mxu0 0.0
      %625 = vmatpush1.msra.mxu0 1.0
      %626 = vmatprep.subr.mxu0 0.0
      %627 = vmatpush1.msra.mxu0 1.0
      %628 = vmatprep.subr.mxu0 0.0
      %629 = vmatpush1.msra.mxu0 1.0
      %630 = vmatprep.subr.mxu0 0.0
      %631 = vmatpush1.msra.mxu0 1.0
      %632 = vmatprep.subr.mxu0 0.0
      %633 = vmatpush1.msra.mxu0 1.0
      %634 = vmatprep.subr.mxu0 0.0
      %635 = vmatpush1.msra.mxu0 1.0
      %636 = vmatprep.subr.mxu0 0.0
      %637 = vmatpush1.msra.mxu0 1.0
      %638 = vmatprep.subr.mxu0 0.0
      %639 = vmatpush1.msra.mxu0 1.0
      %640 = vmatprep.subr.mxu0 0.0
      %641 = vmatpush1.msra.mxu0 1.0
      %642 = vmatprep.subr.mxu0 0.0
      %643 = vmatpush1.msra.mxu0 1.0
      %644 = vmatprep.subr.mxu0 0.0
      %645 = vmatpush1.msra.mxu0 1.0
      %646 = vmatprep.subr.mxu0 0.0
      %647 = vmatpush1.msra.mxu0 1.0
      %648 = vmatprep.subr.mxu0 0.0
      %649 = vmatpush1.msra.mxu0 1.0
      %650 = vmatprep.subr.mxu0 0.0
      %651 = vmatpush1.msra.mxu0 1.0
      %652 = vmatprep.subr.mxu0 0.0
      %653 = vmatpush2.msra.mxu0 1.0
      %654 = vmatprep.subr.mxu0 0.0
      %655 = vmatpush2.msra.mxu0 1.0
      %656 = vmatprep.subr.mxu0 0.0
      %657 = vmatpush2.msra.mxu0 1.0
      %658 = vmatprep.subr.mxu0 0.0
      %659 = vmatpush2.msra.mxu0 1.0
      %660 = vmatprep.subr.mxu0 0.0
      %661 = vmatpush2.msra.mxu0 1.0
      %662 = vmatprep.subr.mxu0 0.0
      %663 = vmatpush2.msra.mxu0 1.0
      %664 = vmatprep.subr.mxu0 0.0
      %665 = vmatpush2.msra.mxu0 1.0
      %666 = vmatprep.subr.mxu0 0.0
      %667 = vmatpush2.msra.mxu0 1.0
      %668 = vmatprep.subr.mxu0 0.0
      %669 = vmatpush2.msra.mxu0 1.0
      %670 = vmatprep.subr.mxu0 0.0
      %671 = vmatpush2.msra.mxu0 1.0
      %672 = vmatprep.subr.mxu0 0.0
      %673 = vmatpush2.msra.mxu0 1.0
      %674 = vmatprep.subr.mxu0 0.0
      %675 = vmatpush2.msra.mxu0 1.0
      %676 = vmatprep.subr.mxu0 0.0
      %677 = vmatpush2.msra.mxu0 1.0
      %678 = vmatprep.subr.mxu0 0.0
      %679 = vmatpush2.msra.mxu0 1.0
      %680 = vmatprep.subr.mxu0 0.0
      %681 = vmatpush2.msra.mxu0 1.0
      %682 = vmatprep.subr.mxu0 0.0
      %683 = vmatpush2.msra.mxu0 1.0
      %684 = vmatprep.mubr.f32.mxu0 %v610
      %685 = vmatmul.mubr.f32.gmra.mxu0 %v608
      %v686 = vpop.f32.mrf.mxu0
      %v687 = vadd.f32 0.0, %v686
      %v688 = vpop.f32.mrf.mxu0
      %689 = vmatprep.mubr.f32.mxu0 %v614
      %690 = vmatmul.mubr.f32.gmra.mxu0 %v612
      %v691 = vpop.f32.mrf.mxu0
      %v692 = vadd.f32 0.0, %v691
      %v693 = vpop.f32.mrf.mxu0
      %694 = vmatprep.mubr.f32.mxu0 %v617
      %695 = vmatmul.mubr.f32.gmra.mxu0 %v616
      %v696 = vpop.f32.mrf.mxu0
      %v697 = vadd.f32 0.0, %v696
      %v698 = vpop.f32.mrf.mxu0
      %699 = vmatprep.mubr.f32.mxu0 %v619
      %700 = vmatmul.mubr.f32.gmra.mxu0 %v618
      %v701 = vpop.f32.mrf.mxu0
      %v702 = vadd.f32 0.0, %v701
      %v703 = vpop.f32.mrf.mxu0
      %704 = vdwg.mxu0
      %705 = vmatprep.subr.mxu0 0.0
      %706 = vmatpush1.msra.mxu0 1.0
      %707 = vmatprep.subr.mxu0 0.0
      %708 = vmatpush1.msra.mxu0 1.0
      %709 = vmatprep.subr.mxu0 0.0
      %710 = vmatpush1.msra.mxu0 1.0
      %711 = vmatprep.subr.mxu0 0.0
      %712 = vmatpush1.msra.mxu0 1.0
      %713 = vmatprep.subr.mxu0 0.0
      %714 = vmatpush1.msra.mxu0 1.0
      %715 = vmatprep.subr.mxu0 0.0
      %716 = vmatpush1.msra.mxu0 1.0
      %717 = vmatprep.subr.mxu0 0.0
      %718 = vmatpush1.msra.mxu0 1.0
      %719 = vmatprep.subr.mxu0 0.0
      %720 = vmatpush1.msra.mxu0 1.0
      %721 = vmatprep.subr.mxu0 0.0
      %722 = vmatpush1.msra.mxu0 1.0
      %723 = vmatprep.subr.mxu0 0.0
      %724 = vmatpush1.msra.mxu0 1.0
      %725 = vmatprep.subr.mxu0 0.0
      %726 = vmatpush1.msra.mxu0 1.0
      %727 = vmatprep.subr.mxu0 0.0
      %728 = vmatpush1.msra.mxu0 1.0
      %729 = vmatprep.subr.mxu0 0.0
      %730 = vmatpush1.msra.mxu0 1.0
      %731 = vmatprep.subr.mxu0 0.0
      %732 = vmatpush1.msra.mxu0 1.0
      %733 = vmatprep.subr.mxu0 0.0
      %734 = vmatpush1.msra.mxu0 1.0
      %735 = vmatprep.subr.mxu0 0.0
      %736 = vmatpush1.msra.mxu0 1.0
      %737 = vmatprep.subr.mxu0 0.0
      %738 = vmatpush2.msra.mxu0 1.0
      %739 = vmatprep.subr.mxu0 0.0
      %740 = vmatpush2.msra.mxu0 1.0
      %741 = vmatprep.subr.mxu0 0.0
      %742 = vmatpush2.msra.mxu0 1.0
      %743 = vmatprep.subr.mxu0 0.0
      %744 = vmatpush2.msra.mxu0 1.0
      %745 = vmatprep.subr.mxu0 0.0
      %746 = vmatpush2.msra.mxu0 1.0
      %747 = vmatprep.subr.mxu0 0.0
      %748 = vmatpush2.msra.mxu0 1.0
      %749 = vmatprep.subr.mxu0 0.0
      %750 = vmatpush2.msra.mxu0 1.0
      %751 = vmatprep.subr.mxu0 0.0
      %752 = vmatpush2.msra.mxu0 1.0
      %753 = vmatprep.subr.mxu0 0.0
      %754 = vmatpush2.msra.mxu0 1.0
      %755 = vmatprep.subr.mxu0 0.0
      %756 = vmatpush2.msra.mxu0 1.0
      %757 = vmatprep.subr.mxu0 0.0
      %758 = vmatpush2.msra.mxu0 1.0
      %759 = vmatprep.subr.mxu0 0.0
      %760 = vmatpush2.msra.mxu0 1.0
      %761 = vmatprep.subr.mxu0 0.0
      %762 = vmatpush2.msra.mxu0 1.0
      %763 = vmatprep.subr.mxu0 0.0
      %764 = vmatpush2.msra.mxu0 1.0
      %765 = vmatprep.subr.mxu0 0.0
      %766 = vmatpush2.msra.mxu0 1.0
      %767 = vmatprep.subr.mxu0 0.0
      %768 = vmatpush2.msra.mxu0 1.0
      %769 = vmatprep.mubr.f32.mxu0 %v438
      %770 = vmatmul.mubr.f32.gmra.mxu0 %v436
      %v771 = vpop.f32.mrf.mxu0
      %v772 = vadd.f32 %v687, %v771
      %v773 = vpop.f32.mrf.mxu0
      %774 = vmatprep.mubr.f32.mxu0 %v442
      %775 = vmatmul.mubr.f32.gmra.mxu0 %v440
      %v776 = vpop.f32.mrf.mxu0
      %v777 = vadd.f32 %v692, %v776
      %v778 = vpop.f32.mrf.mxu0
      %779 = vmatprep.mubr.f32.mxu0 %v445
      %780 = vmatmul.mubr.f32.gmra.mxu0 %v444
      %v781 = vpop.f32.mrf.mxu0
      %v782 = vadd.f32 %v697, %v781
      %v783 = vpop.f32.mrf.mxu0
      %784 = vmatprep.mubr.f32.mxu0 %v447
      %785 = vmatmul.mubr.f32.gmra.mxu0 %v446
      %v786 = vpop.f32.mrf.mxu0
      %v787 = vadd.f32 %v702, %v786
      %v788 = vpop.f32.mrf.mxu0
      %789 = vdwg.mxu0
      %v790 = vpack.c.bf16 %v608, %v608
      %v791 = vpack.c.bf16 %v610, %v610
      %v794 = vunpack.c.l.b16 %v790
      %v795 = vunpack.c.l.b16 %v791
      %v796 = vpack.c.b16 %v795, %v794
      %s798 = scalar_lea.vmem %s247, 8
      %799 = vst [vmem:[%s798] sm:$0xff] %v796
      %v800 = vpack.c.bf16 %v612, %v612
      %v801 = vpack.c.bf16 %v614, %v614
      %v804 = vunpack.c.l.b16 %v800
      %v805 = vunpack.c.l.b16 %v801
      %v806 = vpack.c.b16 %v805, %v804
      %s808 = scalar_lea.vmem %s254, 8
      %809 = vst [vmem:[%s808] sm:$0xff] %v806
      %vm810 = vcmask 7168
      %811 = vst.msk [vmem:[%s260] sm:$0xff] %vm810, %v772
      %812 = vst.msk [vmem:[%s260 + $0x8] sm:$0xff] %vm810, %v777
      %813 = vst.msk [vmem:[%s260 + $0x10] sm:$0xff] %vm810, %v782
      %814 = vst.msk [vmem:[%s260 + $0x18] sm:$0xff] %vm810, %v787
      %s815 = smul.u32 2, %s17
      %p816 = scmp.lt.s32.totalorder %s815, 3
      %s817 = scalar_select %p816, %s815, 3
      %s818 = smul.addr %s817, 2
      %s819 = smul.addr %s818, 4
      %s820 = scalar_lea.vmem %s3, %s819
      %s821 = smul.u32 2, %s17
      %p822 = scmp.lt.s32.totalorder %s821, 3
      %s823 = scalar_select %p822, %s821, 3
      %s824 = smul.addr %s823, 2
      %s825 = smul.addr %s824, 4
      %s826 = scalar_lea.vmem %s4, %s825
      %p827 = scmp.lt.s32.totalorder %s17, 1
      %s828 = scalar_select %p827, %s17, 1
      %s829 = smul.addr %s828, 4
      %s830 = smul.addr %s829, 8
      %s831 = scalar_lea.vmem %s5, %s830
      // Predicated region
      $region33: #{basic_block_pallas.3} parent=31 // pred_check
        %p832 = pneg %p103
      $region34: #{basic_block_pallas.3} parent=31 // pred_check_branch
        %834 = sbr.rel (%p832) target = $region36
      $region35: #{basic_block_pallas.3} parent=31 // pred_region
        %s835 = smul.u32 2, %s17
      $region36: #{basic_block_pallas.3} parent=31 // pred_fallthru
        _
      // Predicated region
      $region37: #{basic_block_pallas.3} parent=31 // pred_check
        %p836 = pneg %p129
      $region38: #{basic_block_pallas.3} parent=31 // pred_check_branch
        %838 = sbr.rel (%p836) target = $region40
      $region39: #{basic_block_pallas.3} parent=31 // pred_region
        %s839 = smul.u32 2, %s17
      $region40: #{basic_block_pallas.3} parent=31 // pred_fallthru
        _
      // Predicated region
      $region41: #{basic_block_pallas.3} parent=31 // pred_check
        %p840 = pneg %p155
      $region42: #{basic_block_pallas.3} parent=31 // pred_check_branch
        %842 = sbr.rel (%p840) target = $region44
      $region43: #{basic_block_pallas.3} parent=31 // pred_region
        _
      $region44: #{basic_block_pallas.3} parent=31 // pred_fallthru
        _
    $region32: #{basic_block_pallas.3} parent=5 // pred_fallthru
      _
    %p843 = scmp.le.s32.totalorder 2, %s12
    // Predicated region
    $region45: #{basic_block_pallas.3} parent=5 // pred_check
      %p844 = pneg %p843
    $region46: #{basic_block_pallas.3} parent=5 // pred_check_branch
      %846 = sbr.rel (%p844) target = $region48
    $region47: #{basic_block_pallas.3} parent=5 // pred_region
      %s847 = ssub.s32 %s12, 2
      // Predicated region
      $region49: #{basic_block_pallas.3} parent=47 // pred_check
        %p848 = pneg %p109
      $region50: #{basic_block_pallas.3} parent=47 // pred_check_branch
        %850 = sbr.rel (%p848) target = $region52
      $region51: #{basic_block_pallas.3} parent=47 // pred_region
        %s851 = smul.u32 2, %s18
        %p852 = scmp.lt.s32.totalorder %s851, 3
        %s853 = scalar_select %p852, %s851, 3
        %s854 = smul.addr %s853, 2
        %s855 = smul.addr %s854, 4
        %s856 = scalar_lea.vmem %s3, %s855
      $region52: #{basic_block_pallas.3} parent=47 // pred_fallthru
        _
      // Predicated region
      $region53: #{basic_block_pallas.3} parent=47 // pred_check
        %p857 = pneg %p135
      $region54: #{basic_block_pallas.3} parent=47 // pred_check_branch
        %859 = sbr.rel (%p857) target = $region56
      $region55: #{basic_block_pallas.3} parent=47 // pred_region
        %s860 = smul.u32 2, %s18
        %p861 = scmp.lt.s32.totalorder %s860, 3
        %s862 = scalar_select %p861, %s860, 3
        %s863 = smul.addr %s862, 2
        %s864 = smul.addr %s863, 4
        %s865 = scalar_lea.vmem %s4, %s864
      $region56: #{basic_block_pallas.3} parent=47 // pred_fallthru
        _
      // Predicated region
      $region57: #{basic_block_pallas.3} parent=47 // pred_check
        %p866 = pneg %p161
      $region58: #{basic_block_pallas.3} parent=47 // pred_check_branch
        %868 = sbr.rel (%p866) target = $region60
      $region59: #{basic_block_pallas.3} parent=47 // pred_region
        %p869 = scmp.lt.s32.totalorder %s18, 1
        %s870 = scalar_select %p869, %s18, 1
        %s871 = smul.addr %s870, 4
        %s872 = smul.addr %s871, 8
        %s873 = scalar_lea.vmem %s5, %s872
      $region60: #{basic_block_pallas.3} parent=47 // pred_fallthru
        _
    $region48: #{basic_block_pallas.3} parent=5 // pred_fallthru
      _
  $region6: #{basic_block_pallas.3} parent=0 // loop_footer
    %s16 = sadd.s32 1, %s12
  $region7: #{basic_block_pallas.3} parent=0 // loop_footer_branch
    %11 = sbr.rel target = $region3
  $region8: #{basic_block_pallas.3} parent=0 // loop_exit
    _

</llo_original>
